<compile_context>
chip_gen: v7x
topology: tpu7x:2x2x1
jax: 0.10.0
libtpu: 0.0.40
codegen_flags: <defaults>
</compile_context>

<pallas_src>
import numpy as np
import jax
import jax.numpy as jnp
from jax import lax
from jax.experimental import pallas as pl
from jax.experimental.pallas import tpu as pltpu

KER = 15
PAD = (KER - 1) // 2
BN_EPS = 1e-5


def _full_spec(shape):
    nd = len(shape)
    return pl.BlockSpec(shape, lambda i, _nd=nd: (0,) * _nd)


def _make_conv_bn_kernel(N, L, K, C_in, C_out):
    pad = (K - 1) // 2
    inv_nl = 1.0 / float(N * L)

    def kernel(x_ref, w_ref, b_ref, g_ref, bt_ref, o_ref, xpad_ref, col_ref):
        # x_ref:    (N, C_in, L)        native PyTorch NCL layout (L on lanes)
        # w_ref:    (C_out, K*C_in)     im2col-reshaped Conv1d weight
        # b_ref / g_ref / bt_ref: (C_out, 1)   conv bias / BN gamma / BN beta
        # o_ref:    (N, C_out, L)       native PyTorch NCL layout
        # xpad_ref: (N, C_in, L+2*pad)  zero-padded activations (VMEM scratch)
        # col_ref:  (N, K*C_in, L)      im2col scratch (VMEM)

        # 1) Zero-pad along L once (halos written exactly once, hoisted out of
        #    the K loop).
        if pad > 0:
            xpad_ref[:, :, :pad] = jnp.zeros((N, C_in, pad), jnp.float32)
            xpad_ref[:, :, pad + L:] = jnp.zeros((N, C_in, pad), jnp.float32)
        xpad_ref[:, :, pad:pad + L] = x_ref[...]

        # 2) im2col: column block k is the length-L lane window of xpad at
        #    offset k, i.e. col[n, k*C_in + c, l] = x[n, c, l + k - pad] (or 0).
        for k in range(K):
            col_ref[:, k * C_in:(k + 1) * C_in, :] = xpad_ref[:, :, k:k + L]

        # 3) Conv1d as ONE deep-contraction MXU matmul per sample:
        #    (C_out, K*C_in) @ (K*C_in, L) -> (C_out, L).
        w = w_ref[...]
        y = jnp.stack(
            [jnp.dot(w, col_ref[n], preferred_element_type=jnp.float32)
             for n in range(N)],
            axis=0)                                      # (N, C_out, L)
        y = y + b_ref[...]                               # conv bias, (C_out,1) bcast

        # 4) BatchNorm1d, training mode: per-channel stats over (N, L),
        #    biased variance (matches PyTorch forward normalization).
        mean = jnp.sum(jnp.sum(y, axis=0), axis=1, keepdims=True) * inv_nl
        cen = y - mean
        var = jnp.sum(jnp.sum(cen * cen, axis=0), axis=1, keepdims=True) * inv_nl
        y = cen * lax.rsqrt(var + BN_EPS)
        y = y * g_ref[...] + bt_ref[...]

        o_ref[...] = y                                   # (N, C_out, L)

    return kernel


def outconv1d_v3_forward(x_ncl, weight, bias, gamma, beta):
    """Forward of OutConv1d_v3.  x_ncl: (N, C_in, L) in PyTorch layout."""
    N, C_in, L = x_ncl.shape
    C_out, _, K = weight.shape
    pad = (K - 1) // 2

    x = x_ncl.astype(jnp.float32)                        # no layout change needed
    # (C_out, C_in, K) -> (C_out, K, C_in) -> (C_out, K*C_in); matches im2col order.
    w2 = jnp.transpose(weight, (0, 2, 1)).reshape(C_out, K * C_in).astype(jnp.float32)
    b2 = bias.reshape(C_out, 1).astype(jnp.float32)
    g2 = gamma.reshape(C_out, 1).astype(jnp.float32)
    bt2 = beta.reshape(C_out, 1).astype(jnp.float32)

    return pl.pallas_call(
        _make_conv_bn_kernel(N, L, K, C_in, C_out),
        grid=(1,),
        in_specs=[_full_spec((N, C_in, L)), _full_spec((C_out, K * C_in)),
                  _full_spec((C_out, 1)), _full_spec((C_out, 1)),
                  _full_spec((C_out, 1))],
        out_specs=_full_spec((N, C_out, L)),
        out_shape=jax.ShapeDtypeStruct((N, C_out, L), jnp.float32),
        scratch_shapes=[pltpu.VMEM((N, C_in, L + 2 * pad), jnp.float32),
                        pltpu.VMEM((N, K * C_in, L), jnp.float32)],
        compiler_params=pltpu.CompilerParams(
            dimension_semantics=("arbitrary",),
            vmem_limit_bytes=64 * 1024 * 1024),
    )(x, w2, b2, g2, bt2)
    # TODO(synk): for large N*L, tile (N, L) over a real grid with a two-pass
    # BatchNorm grid reduction instead of holding the whole problem in one VMEM block.


def _reference(x_ncl, weight, bias, gamma, beta, eps=BN_EPS):
    pad = (weight.shape[-1] - 1) // 2
    y = lax.conv_general_dilated(
        x_ncl.astype(jnp.float32), weight.astype(jnp.float32),
        window_strides=(1,), padding=[(pad, pad)],
        dimension_numbers=("NCH", "OIH", "NCH"),
        precision=lax.Precision.HIGHEST)
    y = y + bias[None, :, None]
    mean = jnp.mean(y, axis=(0, 2), keepdims=True)
    var = jnp.mean((y - mean) ** 2, axis=(0, 2), keepdims=True)
    y = (y - mean) * lax.rsqrt(var + eps)
    return y * gamma[None, :, None] + beta[None, :, None]


if __name__ == "__main__":
    N, C_in, C_out, L = 2, 64, 2, 16            # module defaults: in_ch=64, out_ch=2
    key = jax.random.PRNGKey(0)
    kx, kw, kb = jax.random.split(key, 3)

    bound = 1.0 / np.sqrt(C_in * KER)            # PyTorch Conv1d default init range
    weight = jax.random.uniform(kw, (C_out, C_in, KER), jnp.float32, -bound, bound)
    bias = jax.random.uniform(kb, (C_out,), jnp.float32, -bound, bound)
    gamma = jnp.ones((C_out,), jnp.float32)      # fresh BatchNorm1d: weight = 1
    beta = jnp.zeros((C_out,), jnp.float32)      # fresh BatchNorm1d: bias  = 0
    x = jax.random.normal(kx, (N, C_in, L), jnp.float32)    # PyTorch NCL input

    fwd = jax.jit(outconv1d_v3_forward)
    y = jax.block_until_ready(fwd(x, weight, bias, gamma, beta))
    assert y.shape == (N, C_out, L)
    assert bool(jnp.all(jnp.isfinite(y)))

    y_ref = _reference(x, weight, bias, gamma, beta)
    np.testing.assert_allclose(np.asarray(y), np.asarray(y_ref), rtol=1e-2, atol=1e-2)
    print("KERNEL_OK")
</pallas_src>

<mosaic_0001>
module attributes {stable_mosaic.version = 11 : i64} {
  func.func @kernel(%arg0: i32, %arg1: memref<2x64x16xf32, #tpu.memory_space<vmem>>, %arg2: memref<2x960xf32, #tpu.memory_space<vmem>>, %arg3: memref<2x1xf32, #tpu.memory_space<vmem>>, %arg4: memref<2x1xf32, #tpu.memory_space<vmem>>, %arg5: memref<2x1xf32, #tpu.memory_space<vmem>>, %arg6: memref<2x2x16xf32, #tpu.memory_space<vmem>>, %arg7: memref<2x64x30xf32, #tpu.memory_space<vmem>>, %arg8: memref<2x960x16xf32, #tpu.memory_space<vmem>>) attributes {dimension_semantics = [#tpu.dimension_semantics<arbitrary>], iteration_bounds = array<i64: 1>, scalar_prefetch = 0 : i64, scratch_operands = 2 : i64, tpu.core_type = #tpu.core_type<tc>, window_params = [{pipeline_mode = #tpu.pipeline_mode<synchronous>, transform_indices = @transform_0, window_bounds = array<i64: 2, 64, 16>}, {pipeline_mode = #tpu.pipeline_mode<synchronous>, transform_indices = @transform_1, window_bounds = array<i64: 2, 960>}, {pipeline_mode = #tpu.pipeline_mode<synchronous>, transform_indices = @transform_2, window_bounds = array<i64: 2, 1>}, {pipeline_mode = #tpu.pipeline_mode<synchronous>, transform_indices = @transform_3, window_bounds = array<i64: 2, 1>}, {pipeline_mode = #tpu.pipeline_mode<synchronous>, transform_indices = @transform_4, window_bounds = array<i64: 2, 1>}, {pipeline_mode = #tpu.pipeline_mode<synchronous>, transform_indices = @transform_5, window_bounds = array<i64: 2, 2, 16>}]} {
    %cst = arith.constant 0.000000e+00 : f32
    %0 = vector.broadcast %cst : f32 to vector<2x64x7xf32>
    %c0 = arith.constant 0 : index
    %c0_0 = arith.constant 0 : index
    %c0_1 = arith.constant 0 : index
    %1 = vector.load %arg7[%c0, %c0_0, %c0_1] : memref<2x64x30xf32, #tpu.memory_space<vmem>>, vector<2x64x7xf32>
    tpu.vector_store %arg7[%c0, %c0_0, %c0_1], %0 {strides = array<i32>} : memref<2x64x30xf32, #tpu.memory_space<vmem>>, vector<2x64x7xf32>,
    %cst_2 = arith.constant 0.000000e+00 : f32
    %2 = vector.broadcast %cst_2 : f32 to vector<2x64x7xf32>
    %c0_3 = arith.constant 0 : index
    %c0_4 = arith.constant 0 : index
    %c23 = arith.constant 23 : index
    %3 = vector.load %arg7[%c0_3, %c0_4, %c23] : memref<2x64x30xf32, #tpu.memory_space<vmem>>, vector<2x64x7xf32>
    tpu.vector_store %arg7[%c0_3, %c0_4, %c23], %2 {strides = array<i32>} : memref<2x64x30xf32, #tpu.memory_space<vmem>>, vector<2x64x7xf32>,
    %c0_5 = arith.constant 0 : index
    %c0_6 = arith.constant 0 : index
    %c0_7 = arith.constant 0 : index
    %4 = vector.load %arg1[%c0_5, %c0_6, %c0_7] : memref<2x64x16xf32, #tpu.memory_space<vmem>>, vector<2x64x16xf32>
    %c0_8 = arith.constant 0 : index
    %c0_9 = arith.constant 0 : index
    %c7 = arith.constant 7 : index
    %5 = vector.load %arg7[%c0_8, %c0_9, %c7] : memref<2x64x30xf32, #tpu.memory_space<vmem>>, vector<2x64x16xf32>
    tpu.vector_store %arg7[%c0_8, %c0_9, %c7], %4 {strides = array<i32>} : memref<2x64x30xf32, #tpu.memory_space<vmem>>, vector<2x64x16xf32>,
    %c0_10 = arith.constant 0 : index
    %c0_11 = arith.constant 0 : index
    %c0_12 = arith.constant 0 : index
    %6 = vector.load %arg7[%c0_10, %c0_11, %c0_12] : memref<2x64x30xf32, #tpu.memory_space<vmem>>, vector<2x64x16xf32>
    %c0_13 = arith.constant 0 : index
    %c0_14 = arith.constant 0 : index
    %c0_15 = arith.constant 0 : index
    %7 = vector.load %arg8[%c0_13, %c0_14, %c0_15] : memref<2x960x16xf32, #tpu.memory_space<vmem>>, vector<2x64x16xf32>
    tpu.vector_store %arg8[%c0_13, %c0_14, %c0_15], %6 {strides = array<i32>} : memref<2x960x16xf32, #tpu.memory_space<vmem>>, vector<2x64x16xf32>,
    %c0_16 = arith.constant 0 : index
    %c0_17 = arith.constant 0 : index
    %c1 = arith.constant 1 : index
    %8 = vector.load %arg7[%c0_16, %c0_17, %c1] : memref<2x64x30xf32, #tpu.memory_space<vmem>>, vector<2x64x16xf32>
    %c0_18 = arith.constant 0 : index
    %c64 = arith.constant 64 : index
    %c0_19 = arith.constant 0 : index
    %9 = vector.load %arg8[%c0_18, %c64, %c0_19] : memref<2x960x16xf32, #tpu.memory_space<vmem>>, vector<2x64x16xf32>
    tpu.vector_store %arg8[%c0_18, %c64, %c0_19], %8 {strides = array<i32>} : memref<2x960x16xf32, #tpu.memory_space<vmem>>, vector<2x64x16xf32>,
    %c0_20 = arith.constant 0 : index
    %c0_21 = arith.constant 0 : index
    %c2 = arith.constant 2 : index
    %10 = vector.load %arg7[%c0_20, %c0_21, %c2] : memref<2x64x30xf32, #tpu.memory_space<vmem>>, vector<2x64x16xf32>
    %c0_22 = arith.constant 0 : index
    %c128 = arith.constant 128 : index
    %c0_23 = arith.constant 0 : index
    %11 = vector.load %arg8[%c0_22, %c128, %c0_23] : memref<2x960x16xf32, #tpu.memory_space<vmem>>, vector<2x64x16xf32>
    tpu.vector_store %arg8[%c0_22, %c128, %c0_23], %10 {strides = array<i32>} : memref<2x960x16xf32, #tpu.memory_space<vmem>>, vector<2x64x16xf32>,
    %c0_24 = arith.constant 0 : index
    %c0_25 = arith.constant 0 : index
    %c3 = arith.constant 3 : index
    %12 = vector.load %arg7[%c0_24, %c0_25, %c3] : memref<2x64x30xf32, #tpu.memory_space<vmem>>, vector<2x64x16xf32>
    %c0_26 = arith.constant 0 : index
    %c192 = arith.constant 192 : index
    %c0_27 = arith.constant 0 : index
    %13 = vector.load %arg8[%c0_26, %c192, %c0_27] : memref<2x960x16xf32, #tpu.memory_space<vmem>>, vector<2x64x16xf32>
    tpu.vector_store %arg8[%c0_26, %c192, %c0_27], %12 {strides = array<i32>} : memref<2x960x16xf32, #tpu.memory_space<vmem>>, vector<2x64x16xf32>,
    %c0_28 = arith.constant 0 : index
    %c0_29 = arith.constant 0 : index
    %c4 = arith.constant 4 : index
    %14 = vector.load %arg7[%c0_28, %c0_29, %c4] : memref<2x64x30xf32, #tpu.memory_space<vmem>>, vector<2x64x16xf32>
    %c0_30 = arith.constant 0 : index
    %c256 = arith.constant 256 : index
    %c0_31 = arith.constant 0 : index
    %15 = vector.load %arg8[%c0_30, %c256, %c0_31] : memref<2x960x16xf32, #tpu.memory_space<vmem>>, vector<2x64x16xf32>
    tpu.vector_store %arg8[%c0_30, %c256, %c0_31], %14 {strides = array<i32>} : memref<2x960x16xf32, #tpu.memory_space<vmem>>, vector<2x64x16xf32>,
    %c0_32 = arith.constant 0 : index
    %c0_33 = arith.constant 0 : index
    %c5 = arith.constant 5 : index
    %16 = vector.load %arg7[%c0_32, %c0_33, %c5] : memref<2x64x30xf32, #tpu.memory_space<vmem>>, vector<2x64x16xf32>
    %c0_34 = arith.constant 0 : index
    %c320 = arith.constant 320 : index
    %c0_35 = arith.constant 0 : index
    %17 = vector.load %arg8[%c0_34, %c320, %c0_35] : memref<2x960x16xf32, #tpu.memory_space<vmem>>, vector<2x64x16xf32>
    tpu.vector_store %arg8[%c0_34, %c320, %c0_35], %16 {strides = array<i32>} : memref<2x960x16xf32, #tpu.memory_space<vmem>>, vector<2x64x16xf32>,
    %c0_36 = arith.constant 0 : index
    %c0_37 = arith.constant 0 : index
    %c6 = arith.constant 6 : index
    %18 = vector.load %arg7[%c0_36, %c0_37, %c6] : memref<2x64x30xf32, #tpu.memory_space<vmem>>, vector<2x64x16xf32>
    %c0_38 = arith.constant 0 : index
    %c384 = arith.constant 384 : index
    %c0_39 = arith.constant 0 : index
    %19 = vector.load %arg8[%c0_38, %c384, %c0_39] : memref<2x960x16xf32, #tpu.memory_space<vmem>>, vector<2x64x16xf32>
    tpu.vector_store %arg8[%c0_38, %c384, %c0_39], %18 {strides = array<i32>} : memref<2x960x16xf32, #tpu.memory_space<vmem>>, vector<2x64x16xf32>,
    %c0_40 = arith.constant 0 : index
    %c0_41 = arith.constant 0 : index
    %c7_42 = arith.constant 7 : index
    %20 = vector.load %arg7[%c0_40, %c0_41, %c7_42] : memref<2x64x30xf32, #tpu.memory_space<vmem>>, vector<2x64x16xf32>
    %c0_43 = arith.constant 0 : index
    %c448 = arith.constant 448 : index
    %c0_44 = arith.constant 0 : index
    %21 = vector.load %arg8[%c0_43, %c448, %c0_44] : memref<2x960x16xf32, #tpu.memory_space<vmem>>, vector<2x64x16xf32>
    tpu.vector_store %arg8[%c0_43, %c448, %c0_44], %20 {strides = array<i32>} : memref<2x960x16xf32, #tpu.memory_space<vmem>>, vector<2x64x16xf32>,
    %c0_45 = arith.constant 0 : index
    %c0_46 = arith.constant 0 : index
    %c8 = arith.constant 8 : index
    %22 = vector.load %arg7[%c0_45, %c0_46, %c8] : memref<2x64x30xf32, #tpu.memory_space<vmem>>, vector<2x64x16xf32>
    %c0_47 = arith.constant 0 : index
    %c512 = arith.constant 512 : index
    %c0_48 = arith.constant 0 : index
    %23 = vector.load %arg8[%c0_47, %c512, %c0_48] : memref<2x960x16xf32, #tpu.memory_space<vmem>>, vector<2x64x16xf32>
    tpu.vector_store %arg8[%c0_47, %c512, %c0_48], %22 {strides = array<i32>} : memref<2x960x16xf32, #tpu.memory_space<vmem>>, vector<2x64x16xf32>,
    %c0_49 = arith.constant 0 : index
    %c0_50 = arith.constant 0 : index
    %c9 = arith.constant 9 : index
    %24 = vector.load %arg7[%c0_49, %c0_50, %c9] : memref<2x64x30xf32, #tpu.memory_space<vmem>>, vector<2x64x16xf32>
    %c0_51 = arith.constant 0 : index
    %c576 = arith.constant 576 : index
    %c0_52 = arith.constant 0 : index
    %25 = vector.load %arg8[%c0_51, %c576, %c0_52] : memref<2x960x16xf32, #tpu.memory_space<vmem>>, vector<2x64x16xf32>
    tpu.vector_store %arg8[%c0_51, %c576, %c0_52], %24 {strides = array<i32>} : memref<2x960x16xf32, #tpu.memory_space<vmem>>, vector<2x64x16xf32>,
    %c0_53 = arith.constant 0 : index
    %c0_54 = arith.constant 0 : index
    %c10 = arith.constant 10 : index
    %26 = vector.load %arg7[%c0_53, %c0_54, %c10] : memref<2x64x30xf32, #tpu.memory_space<vmem>>, vector<2x64x16xf32>
    %c0_55 = arith.constant 0 : index
    %c640 = arith.constant 640 : index
    %c0_56 = arith.constant 0 : index
    %27 = vector.load %arg8[%c0_55, %c640, %c0_56] : memref<2x960x16xf32, #tpu.memory_space<vmem>>, vector<2x64x16xf32>
    tpu.vector_store %arg8[%c0_55, %c640, %c0_56], %26 {strides = array<i32>} : memref<2x960x16xf32, #tpu.memory_space<vmem>>, vector<2x64x16xf32>,
    %c0_57 = arith.constant 0 : index
    %c0_58 = arith.constant 0 : index
    %c11 = arith.constant 11 : index
    %28 = vector.load %arg7[%c0_57, %c0_58, %c11] : memref<2x64x30xf32, #tpu.memory_space<vmem>>, vector<2x64x16xf32>
    %c0_59 = arith.constant 0 : index
    %c704 = arith.constant 704 : index
    %c0_60 = arith.constant 0 : index
    %29 = vector.load %arg8[%c0_59, %c704, %c0_60] : memref<2x960x16xf32, #tpu.memory_space<vmem>>, vector<2x64x16xf32>
    tpu.vector_store %arg8[%c0_59, %c704, %c0_60], %28 {strides = array<i32>} : memref<2x960x16xf32, #tpu.memory_space<vmem>>, vector<2x64x16xf32>,
    %c0_61 = arith.constant 0 : index
    %c0_62 = arith.constant 0 : index
    %c12 = arith.constant 12 : index
    %30 = vector.load %arg7[%c0_61, %c0_62, %c12] : memref<2x64x30xf32, #tpu.memory_space<vmem>>, vector<2x64x16xf32>
    %c0_63 = arith.constant 0 : index
    %c768 = arith.constant 768 : index
    %c0_64 = arith.constant 0 : index
    %31 = vector.load %arg8[%c0_63, %c768, %c0_64] : memref<2x960x16xf32, #tpu.memory_space<vmem>>, vector<2x64x16xf32>
    tpu.vector_store %arg8[%c0_63, %c768, %c0_64], %30 {strides = array<i32>} : memref<2x960x16xf32, #tpu.memory_space<vmem>>, vector<2x64x16xf32>,
    %c0_65 = arith.constant 0 : index
    %c0_66 = arith.constant 0 : index
    %c13 = arith.constant 13 : index
    %32 = vector.load %arg7[%c0_65, %c0_66, %c13] : memref<2x64x30xf32, #tpu.memory_space<vmem>>, vector<2x64x16xf32>
    %c0_67 = arith.constant 0 : index
    %c832 = arith.constant 832 : index
    %c0_68 = arith.constant 0 : index
    %33 = vector.load %arg8[%c0_67, %c832, %c0_68] : memref<2x960x16xf32, #tpu.memory_space<vmem>>, vector<2x64x16xf32>
    tpu.vector_store %arg8[%c0_67, %c832, %c0_68], %32 {strides = array<i32>} : memref<2x960x16xf32, #tpu.memory_space<vmem>>, vector<2x64x16xf32>,
    %c0_69 = arith.constant 0 : index
    %c0_70 = arith.constant 0 : index
    %c14 = arith.constant 14 : index
    %34 = vector.load %arg7[%c0_69, %c0_70, %c14] : memref<2x64x30xf32, #tpu.memory_space<vmem>>, vector<2x64x16xf32>
    %c0_71 = arith.constant 0 : index
    %c896 = arith.constant 896 : index
    %c0_72 = arith.constant 0 : index
    %35 = vector.load %arg8[%c0_71, %c896, %c0_72] : memref<2x960x16xf32, #tpu.memory_space<vmem>>, vector<2x64x16xf32>
    tpu.vector_store %arg8[%c0_71, %c896, %c0_72], %34 {strides = array<i32>} : memref<2x960x16xf32, #tpu.memory_space<vmem>>, vector<2x64x16xf32>,
    %c0_73 = arith.constant 0 : index
    %c0_74 = arith.constant 0 : index
    %36 = vector.load %arg2[%c0_73, %c0_74] : memref<2x960xf32, #tpu.memory_space<vmem>>, vector<2x960xf32>
    %c0_75 = arith.constant 0 : index
    %c0_76 = arith.constant 0 : index
    %c0_77 = arith.constant 0 : index
    %37 = vector.load %arg8[%c0_75, %c0_76, %c0_77] : memref<2x960x16xf32, #tpu.memory_space<vmem>>, vector<1x960x16xf32>
    %38 = vector.shape_cast %37 : vector<1x960x16xf32> to vector<960x16xf32>
    %cst_78 = arith.constant dense<0.000000e+00> : vector<2x16xf32>
    %39 = tpu.matmul %36, %38, %cst_78 {dimension_numbers = #tpu.dot_dimension_numbers<[1], [0], [0], [1], [0, 0, 1, 1], [], []>} : vector<2x960xf32>, vector<960x16xf32>, vector<2x16xf32> -> vector<2x16xf32>
    %c1_79 = arith.constant 1 : index
    %c0_80 = arith.constant 0 : index
    %c0_81 = arith.constant 0 : index
    %40 = vector.load %arg8[%c1_79, %c0_80, %c0_81] : memref<2x960x16xf32, #tpu.memory_space<vmem>>, vector<1x960x16xf32>
    %41 = vector.shape_cast %40 : vector<1x960x16xf32> to vector<960x16xf32>
    %cst_82 = arith.constant dense<0.000000e+00> : vector<2x16xf32>
    %42 = tpu.matmul %36, %41, %cst_82 {dimension_numbers = #tpu.dot_dimension_numbers<[1], [0], [0], [1], [0, 0, 1, 1], [], []>} : vector<2x960xf32>, vector<960x16xf32>, vector<2x16xf32> -> vector<2x16xf32>
    %43 = vector.shape_cast %39 : vector<2x16xf32> to vector<1x2x16xf32>
    %44 = vector.shape_cast %42 : vector<2x16xf32> to vector<1x2x16xf32>
    %45 = tpu.concatenate %43, %44 in 0 : vector<1x2x16xf32>, vector<1x2x16xf32> -> vector<2x2x16xf32>
    %c0_83 = arith.constant 0 : index
    %c0_84 = arith.constant 0 : index
    %46 = vector.load %arg3[%c0_83, %c0_84] : memref<2x1xf32, #tpu.memory_space<vmem>>, vector<2x1xf32>
    %47 = vector.shape_cast %46 : vector<2x1xf32> to vector<1x2x1xf32>
    %48 = vector.broadcast %47 : vector<1x2x1xf32> to vector<2x2x16xf32>
    %49 = arith.addf %45, %48 : vector<2x2x16xf32>
    %cst_85 = arith.constant dense<0.000000e+00> : vector<2x16xf32>
    %50 = vector.multi_reduction <add>, %49, %cst_85 [0] : vector<2x2x16xf32> to vector<2x16xf32>
    %cst_86 = arith.constant dense<0.000000e+00> : vector<2xf32>
    %51 = vector.multi_reduction <add>, %50, %cst_86 [1] : vector<2x16xf32> to vector<2xf32>
    %52 = vector.shape_cast %51 : vector<2xf32> to vector<2x1xf32>
    %cst_87 = arith.constant 3.125000e-02 : f32
    %53 = vector.broadcast %cst_87 : f32 to vector<2x1xf32>
    %54 = arith.mulf %52, %53 : vector<2x1xf32>
    %55 = vector.shape_cast %54 : vector<2x1xf32> to vector<1x2x1xf32>
    %56 = vector.broadcast %55 : vector<1x2x1xf32> to vector<2x2x16xf32>
    %57 = arith.subf %49, %56 : vector<2x2x16xf32>
    %58 = arith.mulf %57, %57 : vector<2x2x16xf32>
    %cst_88 = arith.constant dense<0.000000e+00> : vector<2x16xf32>
    %59 = vector.multi_reduction <add>, %58, %cst_88 [0] : vector<2x2x16xf32> to vector<2x16xf32>
    %cst_89 = arith.constant dense<0.000000e+00> : vector<2xf32>
    %60 = vector.multi_reduction <add>, %59, %cst_89 [1] : vector<2x16xf32> to vector<2xf32>
    %61 = vector.shape_cast %60 : vector<2xf32> to vector<2x1xf32>
    %cst_90 = arith.constant 3.125000e-02 : f32
    %62 = vector.broadcast %cst_90 : f32 to vector<2x1xf32>
    %63 = arith.mulf %61, %62 : vector<2x1xf32>
    %cst_91 = arith.constant 9.99999974E-6 : f32
    %64 = vector.broadcast %cst_91 : f32 to vector<2x1xf32>
    %65 = arith.addf %63, %64 : vector<2x1xf32>
    %66 = math.rsqrt %65 : vector<2x1xf32>
    %67 = vector.shape_cast %66 : vector<2x1xf32> to vector<1x2x1xf32>
    %68 = vector.broadcast %67 : vector<1x2x1xf32> to vector<2x2x16xf32>
    %69 = arith.mulf %57, %68 : vector<2x2x16xf32>
    %c0_92 = arith.constant 0 : index
    %c0_93 = arith.constant 0 : index
    %70 = vector.load %arg4[%c0_92, %c0_93] : memref<2x1xf32, #tpu.memory_space<vmem>>, vector<2x1xf32>
    %71 = vector.shape_cast %70 : vector<2x1xf32> to vector<1x2x1xf32>
    %72 = vector.broadcast %71 : vector<1x2x1xf32> to vector<2x2x16xf32>
    %73 = arith.mulf %69, %72 : vector<2x2x16xf32>
    %c0_94 = arith.constant 0 : index
    %c0_95 = arith.constant 0 : index
    %74 = vector.load %arg5[%c0_94, %c0_95] : memref<2x1xf32, #tpu.memory_space<vmem>>, vector<2x1xf32>
    %75 = vector.shape_cast %74 : vector<2x1xf32> to vector<1x2x1xf32>
    %76 = vector.broadcast %75 : vector<1x2x1xf32> to vector<2x2x16xf32>
    %77 = arith.addf %73, %76 : vector<2x2x16xf32>
    %c0_96 = arith.constant 0 : index
    %c0_97 = arith.constant 0 : index
    %c0_98 = arith.constant 0 : index
    %78 = vector.load %arg6[%c0_96, %c0_97, %c0_98] : memref<2x2x16xf32, #tpu.memory_space<vmem>>, vector<2x2x16xf32>
    tpu.vector_store %arg6[%c0_96, %c0_97, %c0_98], %77 {strides = array<i32>} : memref<2x2x16xf32, #tpu.memory_space<vmem>>, vector<2x2x16xf32>,
    return
  }
  func.func @transform_0(%arg0: i32) -> (i32, i32, i32) {
    %c0_i32 = arith.constant 0 : i32
    %c0_i32_0 = arith.constant 0 : i32
    %c0_i32_1 = arith.constant 0 : i32
    %c0_i32_2 = arith.constant 0 : i32
    return %c0_i32, %c0_i32_0, %c0_i32_1 : i32, i32, i32
  }
  func.func @transform_1(%arg0: i32) -> (i32, i32) {
    %c0_i32 = arith.constant 0 : i32
    %c0_i32_0 = arith.constant 0 : i32
    %c0_i32_1 = arith.constant 0 : i32
    return %c0_i32, %c0_i32_0 : i32, i32
  }
  func.func @transform_2(%arg0: i32) -> (i32, i32) {
    %c0_i32 = arith.constant 0 : i32
    %c0_i32_0 = arith.constant 0 : i32
    %c0_i32_1 = arith.constant 0 : i32
    return %c0_i32, %c0_i32_0 : i32, i32
  }
  func.func @transform_3(%arg0: i32) -> (i32, i32) {
    %c0_i32 = arith.constant 0 : i32
    %c0_i32_0 = arith.constant 0 : i32
    %c0_i32_1 = arith.constant 0 : i32
    return %c0_i32, %c0_i32_0 : i32, i32
  }
  func.func @transform_4(%arg0: i32) -> (i32, i32) {
    %c0_i32 = arith.constant 0 : i32
    %c0_i32_0 = arith.constant 0 : i32
    %c0_i32_1 = arith.constant 0 : i32
    return %c0_i32, %c0_i32_0 : i32, i32
  }
  func.func @transform_5(%arg0: i32) -> (i32, i32, i32) {
    %c0_i32 = arith.constant 0 : i32
    %c0_i32_0 = arith.constant 0 : i32
    %c0_i32_1 = arith.constant 0 : i32
    %c0_i32_2 = arith.constant 0 : i32
    return %c0_i32, %c0_i32_0, %c0_i32_1 : i32, i32, i32
  }
}

</mosaic_0001>

<llo_original>
// kernel: outconv1d_v3_forward.1
$region0: #{outconv1d_v3_forward.1}
  #allocation0 [shape = 'u32[]', space=smem, size = 0x4, offset = 0x4, fixed_abs, tag = 'smem constant byte address 0x4 - core index']
  #allocation1 [shape = 'u32[144,128]{1,0:T(1,128)}', space=vmem, size = 0x12000, scoped, tag = 'internal scratch']
  #allocation2 [shape = 'f32[2,64,30]{2,1,0:T(8,128)}', space=vmem, size = 0x10000, scoped, tag = 'scratch operand']
  #allocation3 [shape = 'f32[2,960,16]{2,1,0:T(8,128)}', space=vmem, size = 0xf0000, scoped, tag = 'scratch operand']
  %s0 = inlined_call_operand.hbm [shape: f32[2,64,16], index: 0, kind: input, shape index: {}]
  %s1 = inlined_call_operand.hbm [shape: f32[2,960], index: 1, kind: input, shape index: {}]
  %s2 = inlined_call_operand.hbm [shape: f32[2,1], index: 2, kind: input, shape index: {}]
  %s3 = inlined_call_operand.hbm [shape: f32[2,1], index: 3, kind: input, shape index: {}]
  %s4 = inlined_call_operand.hbm [shape: f32[2,1], index: 4, kind: input, shape index: {}]
  %s5 = inlined_call_operand.hbm [shape: f32[2,2,16], index: 5, kind: output, shape index: {}]
  %s6 = sld [smem:[#allocation0]]
  $region50: #{outconv1d_v3_forward.1} parent=0
    _
  %s8 = ssub.s32 1, %s6
  %s9 = scalar_select 0, %s8, %s6
  $region1: #{outconv1d_v3_forward.1} parent=0
    #allocation4 [shape = 'u8[65536]{0}', space=vmem, size = 0x10000, scoped, tag = 'input window, operand 0, single buffered']
    #allocation5 [shape = 's32[1]{0}', space=sflag, size = 0x4, scoped, tag = 'scoped memory for outconv1d_v3_forward.1']
    #allocation6 [shape = 's32[1]{0}', space=sflag, size = 0x4, scoped, tag = 'scoped memory for outconv1d_v3_forward.1']
    #allocation7 [shape = 'u8[8192]{0}', space=vmem, size = 0x2000, scoped, tag = 'input window, operand 1, single buffered']
    #allocation8 [shape = 's32[1]{0}', space=sflag, size = 0x4, scoped, tag = 'scoped memory for outconv1d_v3_forward.1']
    #allocation9 [shape = 'u8[1024]{0}', space=vmem, size = 0x400, scoped, tag = 'input window, operand 2, single buffered']
    #allocation10 [shape = 'u8[1024]{0}', space=vmem, size = 0x400, scoped, tag = 'input window, operand 3, single buffered']
    #allocation11 [shape = 's32[1]{0}', space=sflag, size = 0x4, scoped, tag = 'scoped memory for outconv1d_v3_forward.1']
    #allocation12 [shape = 'u8[1024]{0}', space=vmem, size = 0x400, scoped, tag = 'input window, operand 4, single buffered']
    #allocation13 [shape = 'u8[2048]{0}', space=vmem, size = 0x800, scoped, tag = 'output window, operand 0, single buffered']
    %10 = vsyncpa [#allocation5], 0
    %11 = vsyncpa [#allocation8], 0
    %12 = vsyncpa [#allocation11], 0
    %13 = vsyncpa [#allocation6], 0
    // Predicated region
    $region2: #{outconv1d_v3_forward.1} parent=1 // pred_check
      _
    $region3: #{outconv1d_v3_forward.1} parent=1 // pred_check_branch
      %15 = sbr.rel (0) target = $region5
    $region4: #{outconv1d_v3_forward.1} parent=1 // pred_region
      %s17 = ssub.s32 2048, 2048
      %18 = vsyncadd [#allocation5], %s17
      %s19 = sshll.u32 [#allocation4], 4
      %s20 = int_to_ptr.vmem [resolvable:$true] %s19
      %25 = dma.hbm_to_vmem [thread:$0]  %s0, 2048, %s20, [#allocation5], 128, 128, 8
    $region5: #{outconv1d_v3_forward.1} parent=1 // pred_fallthru
      _
    // Predicated region
    $region6: #{outconv1d_v3_forward.1} parent=1 // pred_check
      _
    $region7: #{outconv1d_v3_forward.1} parent=1 // pred_check_branch
      %27 = sbr.rel (0) target = $region9
    $region8: #{outconv1d_v3_forward.1} parent=1 // pred_region
      %s29 = ssub.s32 256, 256
      %30 = vsyncadd [#allocation8], %s29
      %s32 = sshll.u32 [#allocation7], 4
      %s33 = int_to_ptr.vmem [resolvable:$true] %s32
      %35 = dma.hbm_to_vmem [thread:$0]  %s1, 256, %s33, [#allocation8]
    $region9: #{outconv1d_v3_forward.1} parent=1 // pred_fallthru
      _
    // Predicated region
    $region10: #{outconv1d_v3_forward.1} parent=1 // pred_check
      _
    $region11: #{outconv1d_v3_forward.1} parent=1 // pred_check_branch
      %37 = sbr.rel (0) target = $region13
    $region12: #{outconv1d_v3_forward.1} parent=1 // pred_region
      %s39 = ssub.s32 32, 32
      %40 = vsyncadd [#allocation8], %s39
      %s42 = sshll.u32 [#allocation9], 4
      %s43 = int_to_ptr.vmem [resolvable:$true] %s42
      %45 = dma.hbm_to_vmem [thread:$0]  %s2, 32, %s43, [#allocation8]
    $region13: #{outconv1d_v3_forward.1} parent=1 // pred_fallthru
      _
    // Predicated region
    $region14: #{outconv1d_v3_forward.1} parent=1 // pred_check
      _
    $region15: #{outconv1d_v3_forward.1} parent=1 // pred_check_branch
      %47 = sbr.rel (0) target = $region17
    $region16: #{outconv1d_v3_forward.1} parent=1 // pred_region
      %s49 = ssub.s32 32, 32
      %50 = vsyncadd [#allocation11], %s49
      %s52 = sshll.u32 [#allocation10], 4
      %s53 = int_to_ptr.vmem [resolvable:$true] %s52
      %55 = dma.hbm_to_vmem [thread:$0]  %s3, 32, %s53, [#allocation11]
    $region17: #{outconv1d_v3_forward.1} parent=1 // pred_fallthru
      _
    // Predicated region
    $region18: #{outconv1d_v3_forward.1} parent=1 // pred_check
      _
    $region19: #{outconv1d_v3_forward.1} parent=1 // pred_check_branch
      %57 = sbr.rel (0) target = $region21
    $region20: #{outconv1d_v3_forward.1} parent=1 // pred_region
      %s59 = ssub.s32 32, 32
      %60 = vsyncadd [#allocation11], %s59
      %s62 = sshll.u32 [#allocation12], 4
      %s63 = int_to_ptr.vmem [resolvable:$true] %s62
      %65 = dma.hbm_to_vmem [thread:$0]  %s4, 32, %s63, [#allocation11]
    $region21: #{outconv1d_v3_forward.1} parent=1 // pred_fallthru
      _
    // Predicated region
    $region22: #{outconv1d_v3_forward.1} parent=1 // pred_check
      _
    $region23: #{outconv1d_v3_forward.1} parent=1 // pred_check_branch
      %67 = sbr.rel (0) target = $region25
    $region24: #{outconv1d_v3_forward.1} parent=1 // pred_region
      %68 = dma.done [#allocation5], 2048
    $region25: #{outconv1d_v3_forward.1} parent=1 // pred_fallthru
      _
    // Predicated region
    $region26: #{outconv1d_v3_forward.1} parent=1 // pred_check
      _
    $region27: #{outconv1d_v3_forward.1} parent=1 // pred_check_branch
      %70 = sbr.rel (0) target = $region29
    $region28: #{outconv1d_v3_forward.1} parent=1 // pred_region
      %71 = dma.done [#allocation8], 256
    $region29: #{outconv1d_v3_forward.1} parent=1 // pred_fallthru
      _
    // Predicated region
    $region30: #{outconv1d_v3_forward.1} parent=1 // pred_check
      _
    $region31: #{outconv1d_v3_forward.1} parent=1 // pred_check_branch
      %73 = sbr.rel (0) target = $region33
    $region32: #{outconv1d_v3_forward.1} parent=1 // pred_region
      %74 = dma.done [#allocation8], 32
    $region33: #{outconv1d_v3_forward.1} parent=1 // pred_fallthru
      _
    // Predicated region
    $region34: #{outconv1d_v3_forward.1} parent=1 // pred_check
      _
    $region35: #{outconv1d_v3_forward.1} parent=1 // pred_check_branch
      %76 = sbr.rel (0) target = $region37
    $region36: #{outconv1d_v3_forward.1} parent=1 // pred_region
      %77 = dma.done [#allocation11], 32
    $region37: #{outconv1d_v3_forward.1} parent=1 // pred_fallthru
      _
    // Predicated region
    $region38: #{outconv1d_v3_forward.1} parent=1 // pred_check
      _
    $region39: #{outconv1d_v3_forward.1} parent=1 // pred_check_branch
      %79 = sbr.rel (0) target = $region41
    $region40: #{outconv1d_v3_forward.1} parent=1 // pred_region
      %80 = dma.done [#allocation11], 32
    $region41: #{outconv1d_v3_forward.1} parent=1 // pred_fallthru
      _
    %vm81 = vcmask 56320
    %82 = vst.msk [vmem:[#allocation2] sm:$0xff] %vm81, 0.0
    %83 = vst.msk [vmem:[#allocation2 + $0x8] sm:$0xff] %vm81, 0.0
    %84 = vst.msk [vmem:[#allocation2 + $0x10] sm:$0xff] %vm81, 0.0
    %85 = vst.msk [vmem:[#allocation2 + $0x18] sm:$0xff] %vm81, 0.0
    %86 = vst.msk [vmem:[#allocation2 + $0x20] sm:$0xff] %vm81, 0.0
    %87 = vst.msk [vmem:[#allocation2 + $0x28] sm:$0xff] %vm81, 0.0
    %88 = vst.msk [vmem:[#allocation2 + $0x30] sm:$0xff] %vm81, 0.0
    %89 = vst.msk [vmem:[#allocation2 + $0x38] sm:$0xff] %vm81, 0.0
    %90 = vst.msk [vmem:[#allocation2 + $0x40] sm:$0xff] %vm81, 0.0
    %91 = vst.msk [vmem:[#allocation2 + $0x48] sm:$0xff] %vm81, 0.0
    %92 = vst.msk [vmem:[#allocation2 + $0x50] sm:$0xff] %vm81, 0.0
    %93 = vst.msk [vmem:[#allocation2 + $0x58] sm:$0xff] %vm81, 0.0
    %94 = vst.msk [vmem:[#allocation2 + $0x60] sm:$0xff] %vm81, 0.0
    %95 = vst.msk [vmem:[#allocation2 + $0x68] sm:$0xff] %vm81, 0.0
    %96 = vst.msk [vmem:[#allocation2 + $0x70] sm:$0xff] %vm81, 0.0
    %97 = vst.msk [vmem:[#allocation2 + $0x78] sm:$0xff] %vm81, 0.0
    %vm98 = vcmask 244920
    %99 = vst.msk [vmem:[#allocation2] sm:$0xff] %vm98, 0.0
    %100 = vst.msk [vmem:[#allocation2 + $0x8] sm:$0xff] %vm98, 0.0
    %101 = vst.msk [vmem:[#allocation2 + $0x10] sm:$0xff] %vm98, 0.0
    %102 = vst.msk [vmem:[#allocation2 + $0x18] sm:$0xff] %vm98, 0.0
    %103 = vst.msk [vmem:[#allocation2 + $0x20] sm:$0xff] %vm98, 0.0
    %104 = vst.msk [vmem:[#allocation2 + $0x28] sm:$0xff] %vm98, 0.0
    %105 = vst.msk [vmem:[#allocation2 + $0x30] sm:$0xff] %vm98, 0.0
    %106 = vst.msk [vmem:[#allocation2 + $0x38] sm:$0xff] %vm98, 0.0
    %107 = vst.msk [vmem:[#allocation2 + $0x40] sm:$0xff] %vm98, 0.0
    %108 = vst.msk [vmem:[#allocation2 + $0x48] sm:$0xff] %vm98, 0.0
    %109 = vst.msk [vmem:[#allocation2 + $0x50] sm:$0xff] %vm98, 0.0
    %110 = vst.msk [vmem:[#allocation2 + $0x58] sm:$0xff] %vm98, 0.0
    %111 = vst.msk [vmem:[#allocation2 + $0x60] sm:$0xff] %vm98, 0.0
    %112 = vst.msk [vmem:[#allocation2 + $0x68] sm:$0xff] %vm98, 0.0
    %113 = vst.msk [vmem:[#allocation2 + $0x70] sm:$0xff] %vm98, 0.0
    %114 = vst.msk [vmem:[#allocation2 + $0x78] sm:$0xff] %vm98, 0.0
    %v115 = vld [vmem:[#allocation4] sm:$0xff]
    %v116 = vld [vmem:[#allocation4 + $0x8] sm:$0xff]
    %v117 = vld [vmem:[#allocation4 + $0x10] sm:$0xff]
    %v118 = vld [vmem:[#allocation4 + $0x18] sm:$0xff]
    %v119 = vld [vmem:[#allocation4 + $0x20] sm:$0xff]
    %v120 = vld [vmem:[#allocation4 + $0x28] sm:$0xff]
    %v121 = vld [vmem:[#allocation4 + $0x30] sm:$0xff]
    %v122 = vld [vmem:[#allocation4 + $0x38] sm:$0xff]
    %v123 = vld [vmem:[#allocation4 + $0x40] sm:$0xff]
    %v124 = vld [vmem:[#allocation4 + $0x48] sm:$0xff]
    %v125 = vld [vmem:[#allocation4 + $0x50] sm:$0xff]
    %v126 = vld [vmem:[#allocation4 + $0x58] sm:$0xff]
    %v127 = vld [vmem:[#allocation4 + $0x60] sm:$0xff]
    %v128 = vld [vmem:[#allocation4 + $0x68] sm:$0xff]
    %v129 = vld [vmem:[#allocation4 + $0x70] sm:$0xff]
    %v130 = vld [vmem:[#allocation4 + $0x78] sm:$0xff]
    %147 = vrot.lane.b32.xlu0 %v115, 7
    %v148 = vpop.permute.xlu0 %147
    %149 = vrot.lane.b32.xlu0 %v116, 7
    %v150 = vpop.permute.xlu0 %149
    %151 = vrot.lane.b32.xlu0 %v117, 7
    %v152 = vpop.permute.xlu0 %151
    %153 = vrot.lane.b32.xlu0 %v118, 7
    %v154 = vpop.permute.xlu0 %153
    %155 = vrot.lane.b32.xlu0 %v119, 7
    %v156 = vpop.permute.xlu0 %155
    %157 = vrot.lane.b32.xlu0 %v120, 7
    %v158 = vpop.permute.xlu0 %157
    %159 = vrot.lane.b32.xlu0 %v121, 7
    %v160 = vpop.permute.xlu0 %159
    %161 = vrot.lane.b32.xlu0 %v122, 7
    %v162 = vpop.permute.xlu0 %161
    %163 = vrot.lane.b32.xlu0 %v123, 7
    %v164 = vpop.permute.xlu0 %163
    %165 = vrot.lane.b32.xlu0 %v124, 7
    %v166 = vpop.permute.xlu0 %165
    %167 = vrot.lane.b32.xlu0 %v125, 7
    %v168 = vpop.permute.xlu0 %167
    %169 = vrot.lane.b32.xlu0 %v126, 7
    %v170 = vpop.permute.xlu0 %169
    %171 = vrot.lane.b32.xlu0 %v127, 7
    %v172 = vpop.permute.xlu0 %171
    %173 = vrot.lane.b32.xlu0 %v128, 7
    %v174 = vpop.permute.xlu0 %173
    %175 = vrot.lane.b32.xlu0 %v129, 7
    %v176 = vpop.permute.xlu0 %175
    %177 = vrot.lane.b32.xlu0 %v130, 7
    %v178 = vpop.permute.xlu0 %177
    %vm195 = vcmask 187448
    %196 = vst.msk [vmem:[#allocation2] sm:$0xff] %vm195, %v148
    %197 = vst.msk [vmem:[#allocation2 + $0x8] sm:$0xff] %vm195, %v150
    %198 = vst.msk [vmem:[#allocation2 + $0x10] sm:$0xff] %vm195, %v152
    %199 = vst.msk [vmem:[#allocation2 + $0x18] sm:$0xff] %vm195, %v154
    %200 = vst.msk [vmem:[#allocation2 + $0x20] sm:$0xff] %vm195, %v156
    %201 = vst.msk [vmem:[#allocation2 + $0x28] sm:$0xff] %vm195, %v158
    %202 = vst.msk [vmem:[#allocation2 + $0x30] sm:$0xff] %vm195, %v160
    %203 = vst.msk [vmem:[#allocation2 + $0x38] sm:$0xff] %vm195, %v162
    %204 = vst.msk [vmem:[#allocation2 + $0x40] sm:$0xff] %vm195, %v164
    %205 = vst.msk [vmem:[#allocation2 + $0x48] sm:$0xff] %vm195, %v166
    %206 = vst.msk [vmem:[#allocation2 + $0x50] sm:$0xff] %vm195, %v168
    %207 = vst.msk [vmem:[#allocation2 + $0x58] sm:$0xff] %vm195, %v170
    %208 = vst.msk [vmem:[#allocation2 + $0x60] sm:$0xff] %vm195, %v172
    %209 = vst.msk [vmem:[#allocation2 + $0x68] sm:$0xff] %vm195, %v174
    %210 = vst.msk [vmem:[#allocation2 + $0x70] sm:$0xff] %vm195, %v176
    %211 = vst.msk [vmem:[#allocation2 + $0x78] sm:$0xff] %vm195, %v178
    %v212 = vld [vmem:[#allocation2] sm:$0xff]
    %v213 = vld [vmem:[#allocation2 + $0x8] sm:$0xff]
    %v214 = vld [vmem:[#allocation2 + $0x10] sm:$0xff]
    %v215 = vld [vmem:[#allocation2 + $0x18] sm:$0xff]
    %v216 = vld [vmem:[#allocation2 + $0x20] sm:$0xff]
    %v217 = vld [vmem:[#allocation2 + $0x28] sm:$0xff]
    %v218 = vld [vmem:[#allocation2 + $0x30] sm:$0xff]
    %v219 = vld [vmem:[#allocation2 + $0x38] sm:$0xff]
    %v220 = vld [vmem:[#allocation2 + $0x40] sm:$0xff]
    %v221 = vld [vmem:[#allocation2 + $0x48] sm:$0xff]
    %v222 = vld [vmem:[#allocation2 + $0x50] sm:$0xff]
    %v223 = vld [vmem:[#allocation2 + $0x58] sm:$0xff]
    %v224 = vld [vmem:[#allocation2 + $0x60] sm:$0xff]
    %v225 = vld [vmem:[#allocation2 + $0x68] sm:$0xff]
    %v226 = vld [vmem:[#allocation2 + $0x70] sm:$0xff]
    %v227 = vld [vmem:[#allocation2 + $0x78] sm:$0xff]
    %vm228 = vcmask 130048
    %229 = vst.msk [vmem:[#allocation3] sm:$0xff] %vm228, %v212
    %230 = vst.msk [vmem:[#allocation3 + $0x8] sm:$0xff] %vm228, %v213
    %231 = vst.msk [vmem:[#allocation3 + $0x10] sm:$0xff] %vm228, %v214
    %232 = vst.msk [vmem:[#allocation3 + $0x18] sm:$0xff] %vm228, %v215
    %233 = vst.msk [vmem:[#allocation3 + $0x20] sm:$0xff] %vm228, %v216
    %234 = vst.msk [vmem:[#allocation3 + $0x28] sm:$0xff] %vm228, %v217
    %235 = vst.msk [vmem:[#allocation3 + $0x30] sm:$0xff] %vm228, %v218
    %236 = vst.msk [vmem:[#allocation3 + $0x38] sm:$0xff] %vm228, %v219
    %237 = vst.msk [vmem:[#allocation3 + $0x3c0] sm:$0xff] %vm228, %v220
    %238 = vst.msk [vmem:[#allocation3 + $0x3c8] sm:$0xff] %vm228, %v221
    %239 = vst.msk [vmem:[#allocation3 + $0x3d0] sm:$0xff] %vm228, %v222
    %240 = vst.msk [vmem:[#allocation3 + $0x3d8] sm:$0xff] %vm228, %v223
    %241 = vst.msk [vmem:[#allocation3 + $0x3e0] sm:$0xff] %vm228, %v224
    %242 = vst.msk [vmem:[#allocation3 + $0x3e8] sm:$0xff] %vm228, %v225
    %243 = vst.msk [vmem:[#allocation3 + $0x3f0] sm:$0xff] %vm228, %v226
    %244 = vst.msk [vmem:[#allocation3 + $0x3f8] sm:$0xff] %vm228, %v227
    %v245 = vld [vmem:[#allocation2] sm:$0xff]
    %v246 = vld [vmem:[#allocation2 + $0x8] sm:$0xff]
    %v247 = vld [vmem:[#allocation2 + $0x10] sm:$0xff]
    %v248 = vld [vmem:[#allocation2 + $0x18] sm:$0xff]
    %v249 = vld [vmem:[#allocation2 + $0x20] sm:$0xff]
    %v250 = vld [vmem:[#allocation2 + $0x28] sm:$0xff]
    %v251 = vld [vmem:[#allocation2 + $0x30] sm:$0xff]
    %v252 = vld [vmem:[#allocation2 + $0x38] sm:$0xff]
    %v253 = vld [vmem:[#allocation2 + $0x40] sm:$0xff]
    %v254 = vld [vmem:[#allocation2 + $0x48] sm:$0xff]
    %v255 = vld [vmem:[#allocation2 + $0x50] sm:$0xff]
    %v256 = vld [vmem:[#allocation2 + $0x58] sm:$0xff]
    %v257 = vld [vmem:[#allocation2 + $0x60] sm:$0xff]
    %v258 = vld [vmem:[#allocation2 + $0x68] sm:$0xff]
    %v259 = vld [vmem:[#allocation2 + $0x70] sm:$0xff]
    %v260 = vld [vmem:[#allocation2 + $0x78] sm:$0xff]
    %277 = vrot.lane.b32.xlu0 %v245, 127
    %v278 = vpop.permute.xlu0 %277
    %279 = vrot.lane.b32.xlu0 %v246, 127
    %v280 = vpop.permute.xlu0 %279
    %281 = vrot.lane.b32.xlu0 %v247, 127
    %v282 = vpop.permute.xlu0 %281
    %283 = vrot.lane.b32.xlu0 %v248, 127
    %v284 = vpop.permute.xlu0 %283
    %285 = vrot.lane.b32.xlu0 %v249, 127
    %v286 = vpop.permute.xlu0 %285
    %287 = vrot.lane.b32.xlu0 %v250, 127
    %v288 = vpop.permute.xlu0 %287
    %289 = vrot.lane.b32.xlu0 %v251, 127
    %v290 = vpop.permute.xlu0 %289
    %291 = vrot.lane.b32.xlu0 %v252, 127
    %v292 = vpop.permute.xlu0 %291
    %293 = vrot.lane.b32.xlu0 %v253, 127
    %v294 = vpop.permute.xlu0 %293
    %295 = vrot.lane.b32.xlu0 %v254, 127
    %v296 = vpop.permute.xlu0 %295
    %297 = vrot.lane.b32.xlu0 %v255, 127
    %v298 = vpop.permute.xlu0 %297
    %299 = vrot.lane.b32.xlu0 %v256, 127
    %v300 = vpop.permute.xlu0 %299
    %301 = vrot.lane.b32.xlu0 %v257, 127
    %v302 = vpop.permute.xlu0 %301
    %303 = vrot.lane.b32.xlu0 %v258, 127
    %v304 = vpop.permute.xlu0 %303
    %305 = vrot.lane.b32.xlu0 %v259, 127
    %v306 = vpop.permute.xlu0 %305
    %307 = vrot.lane.b32.xlu0 %v260, 127
    %v308 = vpop.permute.xlu0 %307
    %325 = vst.msk [vmem:[#allocation3 + $0x40] sm:$0xff] %vm228, %v278
    %326 = vst.msk [vmem:[#allocation3 + $0x48] sm:$0xff] %vm228, %v280
    %327 = vst.msk [vmem:[#allocation3 + $0x50] sm:$0xff] %vm228, %v282
    %328 = vst.msk [vmem:[#allocation3 + $0x58] sm:$0xff] %vm228, %v284
    %329 = vst.msk [vmem:[#allocation3 + $0x60] sm:$0xff] %vm228, %v286
    %330 = vst.msk [vmem:[#allocation3 + $0x68] sm:$0xff] %vm228, %v288
    %331 = vst.msk [vmem:[#allocation3 + $0x70] sm:$0xff] %vm228, %v290
    %332 = vst.msk [vmem:[#allocation3 + $0x78] sm:$0xff] %vm228, %v292
    %333 = vst.msk [vmem:[#allocation3 + $0x400] sm:$0xff] %vm228, %v294
    %334 = vst.msk [vmem:[#allocation3 + $0x408] sm:$0xff] %vm228, %v296
    %335 = vst.msk [vmem:[#allocation3 + $0x410] sm:$0xff] %vm228, %v298
    %336 = vst.msk [vmem:[#allocation3 + $0x418] sm:$0xff] %vm228, %v300
    %337 = vst.msk [vmem:[#allocation3 + $0x420] sm:$0xff] %vm228, %v302
    %338 = vst.msk [vmem:[#allocation3 + $0x428] sm:$0xff] %vm228, %v304
    %339 = vst.msk [vmem:[#allocation3 + $0x430] sm:$0xff] %vm228, %v306
    %340 = vst.msk [vmem:[#allocation3 + $0x438] sm:$0xff] %vm228, %v308
    %v341 = vld [vmem:[#allocation2] sm:$0xff]
    %v342 = vld [vmem:[#allocation2 + $0x8] sm:$0xff]
    %v343 = vld [vmem:[#allocation2 + $0x10] sm:$0xff]
    %v344 = vld [vmem:[#allocation2 + $0x18] sm:$0xff]
    %v345 = vld [vmem:[#allocation2 + $0x20] sm:$0xff]
    %v346 = vld [vmem:[#allocation2 + $0x28] sm:$0xff]
    %v347 = vld [vmem:[#allocation2 + $0x30] sm:$0xff]
    %v348 = vld [vmem:[#allocation2 + $0x38] sm:$0xff]
    %v349 = vld [vmem:[#allocation2 + $0x40] sm:$0xff]
    %v350 = vld [vmem:[#allocation2 + $0x48] sm:$0xff]
    %v351 = vld [vmem:[#allocation2 + $0x50] sm:$0xff]
    %v352 = vld [vmem:[#allocation2 + $0x58] sm:$0xff]
    %v353 = vld [vmem:[#allocation2 + $0x60] sm:$0xff]
    %v354 = vld [vmem:[#allocation2 + $0x68] sm:$0xff]
    %v355 = vld [vmem:[#allocation2 + $0x70] sm:$0xff]
    %v356 = vld [vmem:[#allocation2 + $0x78] sm:$0xff]
    %373 = vrot.lane.b32.xlu0 %v341, 126
    %v374 = vpop.permute.xlu0 %373
    %375 = vrot.lane.b32.xlu0 %v342, 126
    %v376 = vpop.permute.xlu0 %375
    %377 = vrot.lane.b32.xlu0 %v343, 126
    %v378 = vpop.permute.xlu0 %377
    %379 = vrot.lane.b32.xlu0 %v344, 126
    %v380 = vpop.permute.xlu0 %379
    %381 = vrot.lane.b32.xlu0 %v345, 126
    %v382 = vpop.permute.xlu0 %381
    %383 = vrot.lane.b32.xlu0 %v346, 126
    %v384 = vpop.permute.xlu0 %383
    %385 = vrot.lane.b32.xlu0 %v347, 126
    %v386 = vpop.permute.xlu0 %385
    %387 = vrot.lane.b32.xlu0 %v348, 126
    %v388 = vpop.permute.xlu0 %387
    %389 = vrot.lane.b32.xlu0 %v349, 126
    %v390 = vpop.permute.xlu0 %389
    %391 = vrot.lane.b32.xlu0 %v350, 126
    %v392 = vpop.permute.xlu0 %391
    %393 = vrot.lane.b32.xlu0 %v351, 126
    %v394 = vpop.permute.xlu0 %393
    %395 = vrot.lane.b32.xlu0 %v352, 126
    %v396 = vpop.permute.xlu0 %395
    %397 = vrot.lane.b32.xlu0 %v353, 126
    %v398 = vpop.permute.xlu0 %397
    %399 = vrot.lane.b32.xlu0 %v354, 126
    %v400 = vpop.permute.xlu0 %399
    %401 = vrot.lane.b32.xlu0 %v355, 126
    %v402 = vpop.permute.xlu0 %401
    %403 = vrot.lane.b32.xlu0 %v356, 126
    %v404 = vpop.permute.xlu0 %403
    %421 = vst.msk [vmem:[#allocation3 + $0x80] sm:$0xff] %vm228, %v374
    %422 = vst.msk [vmem:[#allocation3 + $0x88] sm:$0xff] %vm228, %v376
    %423 = vst.msk [vmem:[#allocation3 + $0x90] sm:$0xff] %vm228, %v378
    %424 = vst.msk [vmem:[#allocation3 + $0x98] sm:$0xff] %vm228, %v380
    %425 = vst.msk [vmem:[#allocation3 + $0xa0] sm:$0xff] %vm228, %v382
    %426 = vst.msk [vmem:[#allocation3 + $0xa8] sm:$0xff] %vm228, %v384
    %427 = vst.msk [vmem:[#allocation3 + $0xb0] sm:$0xff] %vm228, %v386
    %428 = vst.msk [vmem:[#allocation3 + $0xb8] sm:$0xff] %vm228, %v388
    %429 = vst.msk [vmem:[#allocation3 + $0x440] sm:$0xff] %vm228, %v390
    %430 = vst.msk [vmem:[#allocation3 + $0x448] sm:$0xff] %vm228, %v392
    %431 = vst.msk [vmem:[#allocation3 + $0x450] sm:$0xff] %vm228, %v394
    %432 = vst.msk [vmem:[#allocation3 + $0x458] sm:$0xff] %vm228, %v396
    %433 = vst.msk [vmem:[#allocation3 + $0x460] sm:$0xff] %vm228, %v398
    %434 = vst.msk [vmem:[#allocation3 + $0x468] sm:$0xff] %vm228, %v400
    %435 = vst.msk [vmem:[#allocation3 + $0x470] sm:$0xff] %vm228, %v402
    %436 = vst.msk [vmem:[#allocation3 + $0x478] sm:$0xff] %vm228, %v404
    %v437 = vld [vmem:[#allocation2] sm:$0xff]
    %v438 = vld [vmem:[#allocation2 + $0x8] sm:$0xff]
    %v439 = vld [vmem:[#allocation2 + $0x10] sm:$0xff]
    %v440 = vld [vmem:[#allocation2 + $0x18] sm:$0xff]
    %v441 = vld [vmem:[#allocation2 + $0x20] sm:$0xff]
    %v442 = vld [vmem:[#allocation2 + $0x28] sm:$0xff]
    %v443 = vld [vmem:[#allocation2 + $0x30] sm:$0xff]
    %v444 = vld [vmem:[#allocation2 + $0x38] sm:$0xff]
    %v445 = vld [vmem:[#allocation2 + $0x40] sm:$0xff]
    %v446 = vld [vmem:[#allocation2 + $0x48] sm:$0xff]
    %v447 = vld [vmem:[#allocation2 + $0x50] sm:$0xff]
    %v448 = vld [vmem:[#allocation2 + $0x58] sm:$0xff]
    %v449 = vld [vmem:[#allocation2 + $0x60] sm:$0xff]
    %v450 = vld [vmem:[#allocation2 + $0x68] sm:$0xff]
    %v451 = vld [vmem:[#allocation2 + $0x70] sm:$0xff]
    %v452 = vld [vmem:[#allocation2 + $0x78] sm:$0xff]
    %469 = vrot.lane.b32.xlu0 %v437, 125
    %v470 = vpop.permute.xlu0 %469
    %471 = vrot.lane.b32.xlu0 %v438, 125
    %v472 = vpop.permute.xlu0 %471
    %473 = vrot.lane.b32.xlu0 %v439, 125
    %v474 = vpop.permute.xlu0 %473
    %475 = vrot.lane.b32.xlu0 %v440, 125
    %v476 = vpop.permute.xlu0 %475
    %477 = vrot.lane.b32.xlu0 %v441, 125
    %v478 = vpop.permute.xlu0 %477
    %479 = vrot.lane.b32.xlu0 %v442, 125
    %v480 = vpop.permute.xlu0 %479
    %481 = vrot.lane.b32.xlu0 %v443, 125
    %v482 = vpop.permute.xlu0 %481
    %483 = vrot.lane.b32.xlu0 %v444, 125
    %v484 = vpop.permute.xlu0 %483
    %485 = vrot.lane.b32.xlu0 %v445, 125
    %v486 = vpop.permute.xlu0 %485
    %487 = vrot.lane.b32.xlu0 %v446, 125
    %v488 = vpop.permute.xlu0 %487
    %489 = vrot.lane.b32.xlu0 %v447, 125
    %v490 = vpop.permute.xlu0 %489
    %491 = vrot.lane.b32.xlu0 %v448, 125
    %v492 = vpop.permute.xlu0 %491
    %493 = vrot.lane.b32.xlu0 %v449, 125
    %v494 = vpop.permute.xlu0 %493
    %495 = vrot.lane.b32.xlu0 %v450, 125
    %v496 = vpop.permute.xlu0 %495
    %497 = vrot.lane.b32.xlu0 %v451, 125
    %v498 = vpop.permute.xlu0 %497
    %499 = vrot.lane.b32.xlu0 %v452, 125
    %v500 = vpop.permute.xlu0 %499
    %517 = vst.msk [vmem:[#allocation3 + $0xc0] sm:$0xff] %vm228, %v470
    %518 = vst.msk [vmem:[#allocation3 + $0xc8] sm:$0xff] %vm228, %v472
    %519 = vst.msk [vmem:[#allocation3 + $0xd0] sm:$0xff] %vm228, %v474
    %520 = vst.msk [vmem:[#allocation3 + $0xd8] sm:$0xff] %vm228, %v476
    %521 = vst.msk [vmem:[#allocation3 + $0xe0] sm:$0xff] %vm228, %v478
    %522 = vst.msk [vmem:[#allocation3 + $0xe8] sm:$0xff] %vm228, %v480
    %523 = vst.msk [vmem:[#allocation3 + $0xf0] sm:$0xff] %vm228, %v482
    %524 = vst.msk [vmem:[#allocation3 + $0xf8] sm:$0xff] %vm228, %v484
    %525 = vst.msk [vmem:[#allocation3 + $0x480] sm:$0xff] %vm228, %v486
    %526 = vst.msk [vmem:[#allocation3 + $0x488] sm:$0xff] %vm228, %v488
    %527 = vst.msk [vmem:[#allocation3 + $0x490] sm:$0xff] %vm228, %v490
    %528 = vst.msk [vmem:[#allocation3 + $0x498] sm:$0xff] %vm228, %v492
    %529 = vst.msk [vmem:[#allocation3 + $0x4a0] sm:$0xff] %vm228, %v494
    %530 = vst.msk [vmem:[#allocation3 + $0x4a8] sm:$0xff] %vm228, %v496
    %531 = vst.msk [vmem:[#allocation3 + $0x4b0] sm:$0xff] %vm228, %v498
    %532 = vst.msk [vmem:[#allocation3 + $0x4b8] sm:$0xff] %vm228, %v500
    %v533 = vld [vmem:[#allocation2] sm:$0xff]
    %v534 = vld [vmem:[#allocation2 + $0x8] sm:$0xff]
    %v535 = vld [vmem:[#allocation2 + $0x10] sm:$0xff]
    %v536 = vld [vmem:[#allocation2 + $0x18] sm:$0xff]
    %v537 = vld [vmem:[#allocation2 + $0x20] sm:$0xff]
    %v538 = vld [vmem:[#allocation2 + $0x28] sm:$0xff]
    %v539 = vld [vmem:[#allocation2 + $0x30] sm:$0xff]
    %v540 = vld [vmem:[#allocation2 + $0x38] sm:$0xff]
    %v541 = vld [vmem:[#allocation2 + $0x40] sm:$0xff]
    %v542 = vld [vmem:[#allocation2 + $0x48] sm:$0xff]
    %v543 = vld [vmem:[#allocation2 + $0x50] sm:$0xff]
    %v544 = vld [vmem:[#allocation2 + $0x58] sm:$0xff]
    %v545 = vld [vmem:[#allocation2 + $0x60] sm:$0xff]
    %v546 = vld [vmem:[#allocation2 + $0x68] sm:$0xff]
    %v547 = vld [vmem:[#allocation2 + $0x70] sm:$0xff]
    %v548 = vld [vmem:[#allocation2 + $0x78] sm:$0xff]
    %565 = vrot.lane.b32.xlu0 %v533, 124
    %v566 = vpop.permute.xlu0 %565
    %567 = vrot.lane.b32.xlu0 %v534, 124
    %v568 = vpop.permute.xlu0 %567
    %569 = vrot.lane.b32.xlu0 %v535, 124
    %v570 = vpop.permute.xlu0 %569
    %571 = vrot.lane.b32.xlu0 %v536, 124
    %v572 = vpop.permute.xlu0 %571
    %573 = vrot.lane.b32.xlu0 %v537, 124
    %v574 = vpop.permute.xlu0 %573
    %575 = vrot.lane.b32.xlu0 %v538, 124
    %v576 = vpop.permute.xlu0 %575
    %577 = vrot.lane.b32.xlu0 %v539, 124
    %v578 = vpop.permute.xlu0 %577
    %579 = vrot.lane.b32.xlu0 %v540, 124
    %v580 = vpop.permute.xlu0 %579
    %581 = vrot.lane.b32.xlu0 %v541, 124
    %v582 = vpop.permute.xlu0 %581
    %583 = vrot.lane.b32.xlu0 %v542, 124
    %v584 = vpop.permute.xlu0 %583
    %585 = vrot.lane.b32.xlu0 %v543, 124
    %v586 = vpop.permute.xlu0 %585
    %587 = vrot.lane.b32.xlu0 %v544, 124
    %v588 = vpop.permute.xlu0 %587
    %589 = vrot.lane.b32.xlu0 %v545, 124
    %v590 = vpop.permute.xlu0 %589
    %591 = vrot.lane.b32.xlu0 %v546, 124
    %v592 = vpop.permute.xlu0 %591
    %593 = vrot.lane.b32.xlu0 %v547, 124
    %v594 = vpop.permute.xlu0 %593
    %595 = vrot.lane.b32.xlu0 %v548, 124
    %v596 = vpop.permute.xlu0 %595
    %613 = vst.msk [vmem:[#allocation3 + $0x100] sm:$0xff] %vm228, %v566
    %614 = vst.msk [vmem:[#allocation3 + $0x108] sm:$0xff] %vm228, %v568
    %615 = vst.msk [vmem:[#allocation3 + $0x110] sm:$0xff] %vm228, %v570
    %616 = vst.msk [vmem:[#allocation3 + $0x118] sm:$0xff] %vm228, %v572
    %617 = vst.msk [vmem:[#allocation3 + $0x120] sm:$0xff] %vm228, %v574
    %618 = vst.msk [vmem:[#allocation3 + $0x128] sm:$0xff] %vm228, %v576
    %619 = vst.msk [vmem:[#allocation3 + $0x130] sm:$0xff] %vm228, %v578
    %620 = vst.msk [vmem:[#allocation3 + $0x138] sm:$0xff] %vm228, %v580
    %621 = vst.msk [vmem:[#allocation3 + $0x4c0] sm:$0xff] %vm228, %v582
    %622 = vst.msk [vmem:[#allocation3 + $0x4c8] sm:$0xff] %vm228, %v584
    %623 = vst.msk [vmem:[#allocation3 + $0x4d0] sm:$0xff] %vm228, %v586
    %624 = vst.msk [vmem:[#allocation3 + $0x4d8] sm:$0xff] %vm228, %v588
    %625 = vst.msk [vmem:[#allocation3 + $0x4e0] sm:$0xff] %vm228, %v590
    %626 = vst.msk [vmem:[#allocation3 + $0x4e8] sm:$0xff] %vm228, %v592
    %627 = vst.msk [vmem:[#allocation3 + $0x4f0] sm:$0xff] %vm228, %v594
    %628 = vst.msk [vmem:[#allocation3 + $0x4f8] sm:$0xff] %vm228, %v596
    %v629 = vld [vmem:[#allocation2] sm:$0xff]
    %v630 = vld [vmem:[#allocation2 + $0x8] sm:$0xff]
    %v631 = vld [vmem:[#allocation2 + $0x10] sm:$0xff]
    %v632 = vld [vmem:[#allocation2 + $0x18] sm:$0xff]
    %v633 = vld [vmem:[#allocation2 + $0x20] sm:$0xff]
    %v634 = vld [vmem:[#allocation2 + $0x28] sm:$0xff]
    %v635 = vld [vmem:[#allocation2 + $0x30] sm:$0xff]
    %v636 = vld [vmem:[#allocation2 + $0x38] sm:$0xff]
    %v637 = vld [vmem:[#allocation2 + $0x40] sm:$0xff]
    %v638 = vld [vmem:[#allocation2 + $0x48] sm:$0xff]
    %v639 = vld [vmem:[#allocation2 + $0x50] sm:$0xff]
    %v640 = vld [vmem:[#allocation2 + $0x58] sm:$0xff]
    %v641 = vld [vmem:[#allocation2 + $0x60] sm:$0xff]
    %v642 = vld [vmem:[#allocation2 + $0x68] sm:$0xff]
    %v643 = vld [vmem:[#allocation2 + $0x70] sm:$0xff]
    %v644 = vld [vmem:[#allocation2 + $0x78] sm:$0xff]
    %661 = vrot.lane.b32.xlu0 %v629, 123
    %v662 = vpop.permute.xlu0 %661
    %663 = vrot.lane.b32.xlu0 %v630, 123
    %v664 = vpop.permute.xlu0 %663
    %665 = vrot.lane.b32.xlu0 %v631, 123
    %v666 = vpop.permute.xlu0 %665
    %667 = vrot.lane.b32.xlu0 %v632, 123
    %v668 = vpop.permute.xlu0 %667
    %669 = vrot.lane.b32.xlu0 %v633, 123
    %v670 = vpop.permute.xlu0 %669
    %671 = vrot.lane.b32.xlu0 %v634, 123
    %v672 = vpop.permute.xlu0 %671
    %673 = vrot.lane.b32.xlu0 %v635, 123
    %v674 = vpop.permute.xlu0 %673
    %675 = vrot.lane.b32.xlu0 %v636, 123
    %v676 = vpop.permute.xlu0 %675
    %677 = vrot.lane.b32.xlu0 %v637, 123
    %v678 = vpop.permute.xlu0 %677
    %679 = vrot.lane.b32.xlu0 %v638, 123
    %v680 = vpop.permute.xlu0 %679
    %681 = vrot.lane.b32.xlu0 %v639, 123
    %v682 = vpop.permute.xlu0 %681
    %683 = vrot.lane.b32.xlu0 %v640, 123
    %v684 = vpop.permute.xlu0 %683
    %685 = vrot.lane.b32.xlu0 %v641, 123
    %v686 = vpop.permute.xlu0 %685
    %687 = vrot.lane.b32.xlu0 %v642, 123
    %v688 = vpop.permute.xlu0 %687
    %689 = vrot.lane.b32.xlu0 %v643, 123
    %v690 = vpop.permute.xlu0 %689
    %691 = vrot.lane.b32.xlu0 %v644, 123
    %v692 = vpop.permute.xlu0 %691
    %709 = vst.msk [vmem:[#allocation3 + $0x140] sm:$0xff] %vm228, %v662
    %710 = vst.msk [vmem:[#allocation3 + $0x148] sm:$0xff] %vm228, %v664
    %711 = vst.msk [vmem:[#allocation3 + $0x150] sm:$0xff] %vm228, %v666
    %712 = vst.msk [vmem:[#allocation3 + $0x158] sm:$0xff] %vm228, %v668
    %713 = vst.msk [vmem:[#allocation3 + $0x160] sm:$0xff] %vm228, %v670
    %714 = vst.msk [vmem:[#allocation3 + $0x168] sm:$0xff] %vm228, %v672
    %715 = vst.msk [vmem:[#allocation3 + $0x170] sm:$0xff] %vm228, %v674
    %716 = vst.msk [vmem:[#allocation3 + $0x178] sm:$0xff] %vm228, %v676
    %717 = vst.msk [vmem:[#allocation3 + $0x500] sm:$0xff] %vm228, %v678
    %718 = vst.msk [vmem:[#allocation3 + $0x508] sm:$0xff] %vm228, %v680
    %719 = vst.msk [vmem:[#allocation3 + $0x510] sm:$0xff] %vm228, %v682
    %720 = vst.msk [vmem:[#allocation3 + $0x518] sm:$0xff] %vm228, %v684
    %721 = vst.msk [vmem:[#allocation3 + $0x520] sm:$0xff] %vm228, %v686
    %722 = vst.msk [vmem:[#allocation3 + $0x528] sm:$0xff] %vm228, %v688
    %723 = vst.msk [vmem:[#allocation3 + $0x530] sm:$0xff] %vm228, %v690
    %724 = vst.msk [vmem:[#allocation3 + $0x538] sm:$0xff] %vm228, %v692
    %v725 = vld [vmem:[#allocation2] sm:$0xff]
    %v726 = vld [vmem:[#allocation2 + $0x8] sm:$0xff]
    %v727 = vld [vmem:[#allocation2 + $0x10] sm:$0xff]
    %v728 = vld [vmem:[#allocation2 + $0x18] sm:$0xff]
    %v729 = vld [vmem:[#allocation2 + $0x20] sm:$0xff]
    %v730 = vld [vmem:[#allocation2 + $0x28] sm:$0xff]
    %v731 = vld [vmem:[#allocation2 + $0x30] sm:$0xff]
    %v732 = vld [vmem:[#allocation2 + $0x38] sm:$0xff]
    %v733 = vld [vmem:[#allocation2 + $0x40] sm:$0xff]
    %v734 = vld [vmem:[#allocation2 + $0x48] sm:$0xff]
    %v735 = vld [vmem:[#allocation2 + $0x50] sm:$0xff]
    %v736 = vld [vmem:[#allocation2 + $0x58] sm:$0xff]
    %v737 = vld [vmem:[#allocation2 + $0x60] sm:$0xff]
    %v738 = vld [vmem:[#allocation2 + $0x68] sm:$0xff]
    %v739 = vld [vmem:[#allocation2 + $0x70] sm:$0xff]
    %v740 = vld [vmem:[#allocation2 + $0x78] sm:$0xff]
    %757 = vrot.lane.b32.xlu0 %v725, 122
    %v758 = vpop.permute.xlu0 %757
    %759 = vrot.lane.b32.xlu0 %v726, 122
    %v760 = vpop.permute.xlu0 %759
    %761 = vrot.lane.b32.xlu0 %v727, 122
    %v762 = vpop.permute.xlu0 %761
    %763 = vrot.lane.b32.xlu0 %v728, 122
    %v764 = vpop.permute.xlu0 %763
    %765 = vrot.lane.b32.xlu0 %v729, 122
    %v766 = vpop.permute.xlu0 %765
    %767 = vrot.lane.b32.xlu0 %v730, 122
    %v768 = vpop.permute.xlu0 %767
    %769 = vrot.lane.b32.xlu0 %v731, 122
    %v770 = vpop.permute.xlu0 %769
    %771 = vrot.lane.b32.xlu0 %v732, 122
    %v772 = vpop.permute.xlu0 %771
    %773 = vrot.lane.b32.xlu0 %v733, 122
    %v774 = vpop.permute.xlu0 %773
    %775 = vrot.lane.b32.xlu0 %v734, 122
    %v776 = vpop.permute.xlu0 %775
    %777 = vrot.lane.b32.xlu0 %v735, 122
    %v778 = vpop.permute.xlu0 %777
    %779 = vrot.lane.b32.xlu0 %v736, 122
    %v780 = vpop.permute.xlu0 %779
    %781 = vrot.lane.b32.xlu0 %v737, 122
    %v782 = vpop.permute.xlu0 %781
    %783 = vrot.lane.b32.xlu0 %v738, 122
    %v784 = vpop.permute.xlu0 %783
    %785 = vrot.lane.b32.xlu0 %v739, 122
    %v786 = vpop.permute.xlu0 %785
    %787 = vrot.lane.b32.xlu0 %v740, 122
    %v788 = vpop.permute.xlu0 %787
    %805 = vst.msk [vmem:[#allocation3 + $0x180] sm:$0xff] %vm228, %v758
    %806 = vst.msk [vmem:[#allocation3 + $0x188] sm:$0xff] %vm228, %v760
    %807 = vst.msk [vmem:[#allocation3 + $0x190] sm:$0xff] %vm228, %v762
    %808 = vst.msk [vmem:[#allocation3 + $0x198] sm:$0xff] %vm228, %v764
    %809 = vst.msk [vmem:[#allocation3 + $0x1a0] sm:$0xff] %vm228, %v766
    %810 = vst.msk [vmem:[#allocation3 + $0x1a8] sm:$0xff] %vm228, %v768
    %811 = vst.msk [vmem:[#allocation3 + $0x1b0] sm:$0xff] %vm228, %v770
    %812 = vst.msk [vmem:[#allocation3 + $0x1b8] sm:$0xff] %vm228, %v772
    %813 = vst.msk [vmem:[#allocation3 + $0x540] sm:$0xff] %vm228, %v774
    %814 = vst.msk [vmem:[#allocation3 + $0x548] sm:$0xff] %vm228, %v776
    %815 = vst.msk [vmem:[#allocation3 + $0x550] sm:$0xff] %vm228, %v778
    %816 = vst.msk [vmem:[#allocation3 + $0x558] sm:$0xff] %vm228, %v780
    %817 = vst.msk [vmem:[#allocation3 + $0x560] sm:$0xff] %vm228, %v782
    %818 = vst.msk [vmem:[#allocation3 + $0x568] sm:$0xff] %vm228, %v784
    %819 = vst.msk [vmem:[#allocation3 + $0x570] sm:$0xff] %vm228, %v786
    %820 = vst.msk [vmem:[#allocation3 + $0x578] sm:$0xff] %vm228, %v788
    %v821 = vld [vmem:[#allocation2] sm:$0xff]
    %v822 = vld [vmem:[#allocation2 + $0x8] sm:$0xff]
    %v823 = vld [vmem:[#allocation2 + $0x10] sm:$0xff]
    %v824 = vld [vmem:[#allocation2 + $0x18] sm:$0xff]
    %v825 = vld [vmem:[#allocation2 + $0x20] sm:$0xff]
    %v826 = vld [vmem:[#allocation2 + $0x28] sm:$0xff]
    %v827 = vld [vmem:[#allocation2 + $0x30] sm:$0xff]
    %v828 = vld [vmem:[#allocation2 + $0x38] sm:$0xff]
    %v829 = vld [vmem:[#allocation2 + $0x40] sm:$0xff]
    %v830 = vld [vmem:[#allocation2 + $0x48] sm:$0xff]
    %v831 = vld [vmem:[#allocation2 + $0x50] sm:$0xff]
    %v832 = vld [vmem:[#allocation2 + $0x58] sm:$0xff]
    %v833 = vld [vmem:[#allocation2 + $0x60] sm:$0xff]
    %v834 = vld [vmem:[#allocation2 + $0x68] sm:$0xff]
    %v835 = vld [vmem:[#allocation2 + $0x70] sm:$0xff]
    %v836 = vld [vmem:[#allocation2 + $0x78] sm:$0xff]
    %853 = vrot.lane.b32.xlu0 %v821, 121
    %v854 = vpop.permute.xlu0 %853
    %855 = vrot.lane.b32.xlu0 %v822, 121
    %v856 = vpop.permute.xlu0 %855
    %857 = vrot.lane.b32.xlu0 %v823, 121
    %v858 = vpop.permute.xlu0 %857
    %859 = vrot.lane.b32.xlu0 %v824, 121
    %v860 = vpop.permute.xlu0 %859
    %861 = vrot.lane.b32.xlu0 %v825, 121
    %v862 = vpop.permute.xlu0 %861
    %863 = vrot.lane.b32.xlu0 %v826, 121
    %v864 = vpop.permute.xlu0 %863
    %865 = vrot.lane.b32.xlu0 %v827, 121
    %v866 = vpop.permute.xlu0 %865
    %867 = vrot.lane.b32.xlu0 %v828, 121
    %v868 = vpop.permute.xlu0 %867
    %869 = vrot.lane.b32.xlu0 %v829, 121
    %v870 = vpop.permute.xlu0 %869
    %871 = vrot.lane.b32.xlu0 %v830, 121
    %v872 = vpop.permute.xlu0 %871
    %873 = vrot.lane.b32.xlu0 %v831, 121
    %v874 = vpop.permute.xlu0 %873
    %875 = vrot.lane.b32.xlu0 %v832, 121
    %v876 = vpop.permute.xlu0 %875
    %877 = vrot.lane.b32.xlu0 %v833, 121
    %v878 = vpop.permute.xlu0 %877
    %879 = vrot.lane.b32.xlu0 %v834, 121
    %v880 = vpop.permute.xlu0 %879
    %881 = vrot.lane.b32.xlu0 %v835, 121
    %v882 = vpop.permute.xlu0 %881
    %883 = vrot.lane.b32.xlu0 %v836, 121
    %v884 = vpop.permute.xlu0 %883
    %901 = vst.msk [vmem:[#allocation3 + $0x1c0] sm:$0xff] %vm228, %v854
    %902 = vst.msk [vmem:[#allocation3 + $0x1c8] sm:$0xff] %vm228, %v856
    %903 = vst.msk [vmem:[#allocation3 + $0x1d0] sm:$0xff] %vm228, %v858
    %904 = vst.msk [vmem:[#allocation3 + $0x1d8] sm:$0xff] %vm228, %v860
    %905 = vst.msk [vmem:[#allocation3 + $0x1e0] sm:$0xff] %vm228, %v862
    %906 = vst.msk [vmem:[#allocation3 + $0x1e8] sm:$0xff] %vm228, %v864
    %907 = vst.msk [vmem:[#allocation3 + $0x1f0] sm:$0xff] %vm228, %v866
    %908 = vst.msk [vmem:[#allocation3 + $0x1f8] sm:$0xff] %vm228, %v868
    %909 = vst.msk [vmem:[#allocation3 + $0x580] sm:$0xff] %vm228, %v870
    %910 = vst.msk [vmem:[#allocation3 + $0x588] sm:$0xff] %vm228, %v872
    %911 = vst.msk [vmem:[#allocation3 + $0x590] sm:$0xff] %vm228, %v874
    %912 = vst.msk [vmem:[#allocation3 + $0x598] sm:$0xff] %vm228, %v876
    %913 = vst.msk [vmem:[#allocation3 + $0x5a0] sm:$0xff] %vm228, %v878
    %914 = vst.msk [vmem:[#allocation3 + $0x5a8] sm:$0xff] %vm228, %v880
    %915 = vst.msk [vmem:[#allocation3 + $0x5b0] sm:$0xff] %vm228, %v882
    %916 = vst.msk [vmem:[#allocation3 + $0x5b8] sm:$0xff] %vm228, %v884
    %v917 = vld [vmem:[#allocation2] sm:$0xff]
    %v918 = vld [vmem:[#allocation2 + $0x8] sm:$0xff]
    %v919 = vld [vmem:[#allocation2 + $0x10] sm:$0xff]
    %v920 = vld [vmem:[#allocation2 + $0x18] sm:$0xff]
    %v921 = vld [vmem:[#allocation2 + $0x20] sm:$0xff]
    %v922 = vld [vmem:[#allocation2 + $0x28] sm:$0xff]
    %v923 = vld [vmem:[#allocation2 + $0x30] sm:$0xff]
    %v924 = vld [vmem:[#allocation2 + $0x38] sm:$0xff]
    %v925 = vld [vmem:[#allocation2 + $0x40] sm:$0xff]
    %v926 = vld [vmem:[#allocation2 + $0x48] sm:$0xff]
    %v927 = vld [vmem:[#allocation2 + $0x50] sm:$0xff]
    %v928 = vld [vmem:[#allocation2 + $0x58] sm:$0xff]
    %v929 = vld [vmem:[#allocation2 + $0x60] sm:$0xff]
    %v930 = vld [vmem:[#allocation2 + $0x68] sm:$0xff]
    %v931 = vld [vmem:[#allocation2 + $0x70] sm:$0xff]
    %v932 = vld [vmem:[#allocation2 + $0x78] sm:$0xff]
    %949 = vrot.lane.b32.xlu0 %v917, 120
    %v950 = vpop.permute.xlu0 %949
    %951 = vrot.lane.b32.xlu0 %v918, 120
    %v952 = vpop.permute.xlu0 %951
    %953 = vrot.lane.b32.xlu0 %v919, 120
    %v954 = vpop.permute.xlu0 %953
    %955 = vrot.lane.b32.xlu0 %v920, 120
    %v956 = vpop.permute.xlu0 %955
    %957 = vrot.lane.b32.xlu0 %v921, 120
    %v958 = vpop.permute.xlu0 %957
    %959 = vrot.lane.b32.xlu0 %v922, 120
    %v960 = vpop.permute.xlu0 %959
    %961 = vrot.lane.b32.xlu0 %v923, 120
    %v962 = vpop.permute.xlu0 %961
    %963 = vrot.lane.b32.xlu0 %v924, 120
    %v964 = vpop.permute.xlu0 %963
    %965 = vrot.lane.b32.xlu0 %v925, 120
    %v966 = vpop.permute.xlu0 %965
    %967 = vrot.lane.b32.xlu0 %v926, 120
    %v968 = vpop.permute.xlu0 %967
    %969 = vrot.lane.b32.xlu0 %v927, 120
    %v970 = vpop.permute.xlu0 %969
    %971 = vrot.lane.b32.xlu0 %v928, 120
    %v972 = vpop.permute.xlu0 %971
    %973 = vrot.lane.b32.xlu0 %v929, 120
    %v974 = vpop.permute.xlu0 %973
    %975 = vrot.lane.b32.xlu0 %v930, 120
    %v976 = vpop.permute.xlu0 %975
    %977 = vrot.lane.b32.xlu0 %v931, 120
    %v978 = vpop.permute.xlu0 %977
    %979 = vrot.lane.b32.xlu0 %v932, 120
    %v980 = vpop.permute.xlu0 %979
    %997 = vst.msk [vmem:[#allocation3 + $0x200] sm:$0xff] %vm228, %v950
    %998 = vst.msk [vmem:[#allocation3 + $0x208] sm:$0xff] %vm228, %v952
    %999 = vst.msk [vmem:[#allocation3 + $0x210] sm:$0xff] %vm228, %v954
    %1000 = vst.msk [vmem:[#allocation3 + $0x218] sm:$0xff] %vm228, %v956
    %1001 = vst.msk [vmem:[#allocation3 + $0x220] sm:$0xff] %vm228, %v958
    %1002 = vst.msk [vmem:[#allocation3 + $0x228] sm:$0xff] %vm228, %v960
    %1003 = vst.msk [vmem:[#allocation3 + $0x230] sm:$0xff] %vm228, %v962
    %1004 = vst.msk [vmem:[#allocation3 + $0x238] sm:$0xff] %vm228, %v964
    %1005 = vst.msk [vmem:[#allocation3 + $0x5c0] sm:$0xff] %vm228, %v966
    %1006 = vst.msk [vmem:[#allocation3 + $0x5c8] sm:$0xff] %vm228, %v968
    %1007 = vst.msk [vmem:[#allocation3 + $0x5d0] sm:$0xff] %vm228, %v970
    %1008 = vst.msk [vmem:[#allocation3 + $0x5d8] sm:$0xff] %vm228, %v972
    %1009 = vst.msk [vmem:[#allocation3 + $0x5e0] sm:$0xff] %vm228, %v974
    %1010 = vst.msk [vmem:[#allocation3 + $0x5e8] sm:$0xff] %vm228, %v976
    %1011 = vst.msk [vmem:[#allocation3 + $0x5f0] sm:$0xff] %vm228, %v978
    %1012 = vst.msk [vmem:[#allocation3 + $0x5f8] sm:$0xff] %vm228, %v980
    %v1013 = vld [vmem:[#allocation2] sm:$0xff]
    %v1014 = vld [vmem:[#allocation2 + $0x8] sm:$0xff]
    %v1015 = vld [vmem:[#allocation2 + $0x10] sm:$0xff]
    %v1016 = vld [vmem:[#allocation2 + $0x18] sm:$0xff]
    %v1017 = vld [vmem:[#allocation2 + $0x20] sm:$0xff]
    %v1018 = vld [vmem:[#allocation2 + $0x28] sm:$0xff]
    %v1019 = vld [vmem:[#allocation2 + $0x30] sm:$0xff]
    %v1020 = vld [vmem:[#allocation2 + $0x38] sm:$0xff]
    %v1021 = vld [vmem:[#allocation2 + $0x40] sm:$0xff]
    %v1022 = vld [vmem:[#allocation2 + $0x48] sm:$0xff]
    %v1023 = vld [vmem:[#allocation2 + $0x50] sm:$0xff]
    %v1024 = vld [vmem:[#allocation2 + $0x58] sm:$0xff]
    %v1025 = vld [vmem:[#allocation2 + $0x60] sm:$0xff]
    %v1026 = vld [vmem:[#allocation2 + $0x68] sm:$0xff]
    %v1027 = vld [vmem:[#allocation2 + $0x70] sm:$0xff]
    %v1028 = vld [vmem:[#allocation2 + $0x78] sm:$0xff]
    %1045 = vrot.lane.b32.xlu0 %v1013, 119
    %v1046 = vpop.permute.xlu0 %1045
    %1047 = vrot.lane.b32.xlu0 %v1014, 119
    %v1048 = vpop.permute.xlu0 %1047
    %1049 = vrot.lane.b32.xlu0 %v1015, 119
    %v1050 = vpop.permute.xlu0 %1049
    %1051 = vrot.lane.b32.xlu0 %v1016, 119
    %v1052 = vpop.permute.xlu0 %1051
    %1053 = vrot.lane.b32.xlu0 %v1017, 119
    %v1054 = vpop.permute.xlu0 %1053
    %1055 = vrot.lane.b32.xlu0 %v1018, 119
    %v1056 = vpop.permute.xlu0 %1055
    %1057 = vrot.lane.b32.xlu0 %v1019, 119
    %v1058 = vpop.permute.xlu0 %1057
    %1059 = vrot.lane.b32.xlu0 %v1020, 119
    %v1060 = vpop.permute.xlu0 %1059
    %1061 = vrot.lane.b32.xlu0 %v1021, 119
    %v1062 = vpop.permute.xlu0 %1061
    %1063 = vrot.lane.b32.xlu0 %v1022, 119
    %v1064 = vpop.permute.xlu0 %1063
    %1065 = vrot.lane.b32.xlu0 %v1023, 119
    %v1066 = vpop.permute.xlu0 %1065
    %1067 = vrot.lane.b32.xlu0 %v1024, 119
    %v1068 = vpop.permute.xlu0 %1067
    %1069 = vrot.lane.b32.xlu0 %v1025, 119
    %v1070 = vpop.permute.xlu0 %1069
    %1071 = vrot.lane.b32.xlu0 %v1026, 119
    %v1072 = vpop.permute.xlu0 %1071
    %1073 = vrot.lane.b32.xlu0 %v1027, 119
    %v1074 = vpop.permute.xlu0 %1073
    %1075 = vrot.lane.b32.xlu0 %v1028, 119
    %v1076 = vpop.permute.xlu0 %1075
    %1093 = vst.msk [vmem:[#allocation3 + $0x240] sm:$0xff] %vm228, %v1046
    %1094 = vst.msk [vmem:[#allocation3 + $0x248] sm:$0xff] %vm228, %v1048
    %1095 = vst.msk [vmem:[#allocation3 + $0x250] sm:$0xff] %vm228, %v1050
    %1096 = vst.msk [vmem:[#allocation3 + $0x258] sm:$0xff] %vm228, %v1052
    %1097 = vst.msk [vmem:[#allocation3 + $0x260] sm:$0xff] %vm228, %v1054
    %1098 = vst.msk [vmem:[#allocation3 + $0x268] sm:$0xff] %vm228, %v1056
    %1099 = vst.msk [vmem:[#allocation3 + $0x270] sm:$0xff] %vm228, %v1058
    %1100 = vst.msk [vmem:[#allocation3 + $0x278] sm:$0xff] %vm228, %v1060
    %1101 = vst.msk [vmem:[#allocation3 + $0x600] sm:$0xff] %vm228, %v1062
    %1102 = vst.msk [vmem:[#allocation3 + $0x608] sm:$0xff] %vm228, %v1064
    %1103 = vst.msk [vmem:[#allocation3 + $0x610] sm:$0xff] %vm228, %v1066
    %1104 = vst.msk [vmem:[#allocation3 + $0x618] sm:$0xff] %vm228, %v1068
    %1105 = vst.msk [vmem:[#allocation3 + $0x620] sm:$0xff] %vm228, %v1070
    %1106 = vst.msk [vmem:[#allocation3 + $0x628] sm:$0xff] %vm228, %v1072
    %1107 = vst.msk [vmem:[#allocation3 + $0x630] sm:$0xff] %vm228, %v1074
    %1108 = vst.msk [vmem:[#allocation3 + $0x638] sm:$0xff] %vm228, %v1076
    %v1109 = vld [vmem:[#allocation2] sm:$0xff]
    %v1110 = vld [vmem:[#allocation2 + $0x8] sm:$0xff]
    %v1111 = vld [vmem:[#allocation2 + $0x10] sm:$0xff]
    %v1112 = vld [vmem:[#allocation2 + $0x18] sm:$0xff]
    %v1113 = vld [vmem:[#allocation2 + $0x20] sm:$0xff]
    %v1114 = vld [vmem:[#allocation2 + $0x28] sm:$0xff]
    %v1115 = vld [vmem:[#allocation2 + $0x30] sm:$0xff]
    %v1116 = vld [vmem:[#allocation2 + $0x38] sm:$0xff]
    %v1117 = vld [vmem:[#allocation2 + $0x40] sm:$0xff]
    %v1118 = vld [vmem:[#allocation2 + $0x48] sm:$0xff]
    %v1119 = vld [vmem:[#allocation2 + $0x50] sm:$0xff]
    %v1120 = vld [vmem:[#allocation2 + $0x58] sm:$0xff]
    %v1121 = vld [vmem:[#allocation2 + $0x60] sm:$0xff]
    %v1122 = vld [vmem:[#allocation2 + $0x68] sm:$0xff]
    %v1123 = vld [vmem:[#allocation2 + $0x70] sm:$0xff]
    %v1124 = vld [vmem:[#allocation2 + $0x78] sm:$0xff]
    %1141 = vrot.lane.b32.xlu0 %v1109, 118
    %v1142 = vpop.permute.xlu0 %1141
    %1143 = vrot.lane.b32.xlu0 %v1110, 118
    %v1144 = vpop.permute.xlu0 %1143
    %1145 = vrot.lane.b32.xlu0 %v1111, 118
    %v1146 = vpop.permute.xlu0 %1145
    %1147 = vrot.lane.b32.xlu0 %v1112, 118
    %v1148 = vpop.permute.xlu0 %1147
    %1149 = vrot.lane.b32.xlu0 %v1113, 118
    %v1150 = vpop.permute.xlu0 %1149
    %1151 = vrot.lane.b32.xlu0 %v1114, 118
    %v1152 = vpop.permute.xlu0 %1151
    %1153 = vrot.lane.b32.xlu0 %v1115, 118
    %v1154 = vpop.permute.xlu0 %1153
    %1155 = vrot.lane.b32.xlu0 %v1116, 118
    %v1156 = vpop.permute.xlu0 %1155
    %1157 = vrot.lane.b32.xlu0 %v1117, 118
    %v1158 = vpop.permute.xlu0 %1157
    %1159 = vrot.lane.b32.xlu0 %v1118, 118
    %v1160 = vpop.permute.xlu0 %1159
    %1161 = vrot.lane.b32.xlu0 %v1119, 118
    %v1162 = vpop.permute.xlu0 %1161
    %1163 = vrot.lane.b32.xlu0 %v1120, 118
    %v1164 = vpop.permute.xlu0 %1163
    %1165 = vrot.lane.b32.xlu0 %v1121, 118
    %v1166 = vpop.permute.xlu0 %1165
    %1167 = vrot.lane.b32.xlu0 %v1122, 118
    %v1168 = vpop.permute.xlu0 %1167
    %1169 = vrot.lane.b32.xlu0 %v1123, 118
    %v1170 = vpop.permute.xlu0 %1169
    %1171 = vrot.lane.b32.xlu0 %v1124, 118
    %v1172 = vpop.permute.xlu0 %1171
    %1189 = vst.msk [vmem:[#allocation3 + $0x280] sm:$0xff] %vm228, %v1142
    %1190 = vst.msk [vmem:[#allocation3 + $0x288] sm:$0xff] %vm228, %v1144
    %1191 = vst.msk [vmem:[#allocation3 + $0x290] sm:$0xff] %vm228, %v1146
    %1192 = vst.msk [vmem:[#allocation3 + $0x298] sm:$0xff] %vm228, %v1148
    %1193 = vst.msk [vmem:[#allocation3 + $0x2a0] sm:$0xff] %vm228, %v1150
    %1194 = vst.msk [vmem:[#allocation3 + $0x2a8] sm:$0xff] %vm228, %v1152
    %1195 = vst.msk [vmem:[#allocation3 + $0x2b0] sm:$0xff] %vm228, %v1154
    %1196 = vst.msk [vmem:[#allocation3 + $0x2b8] sm:$0xff] %vm228, %v1156
    %1197 = vst.msk [vmem:[#allocation3 + $0x640] sm:$0xff] %vm228, %v1158
    %1198 = vst.msk [vmem:[#allocation3 + $0x648] sm:$0xff] %vm228, %v1160
    %1199 = vst.msk [vmem:[#allocation3 + $0x650] sm:$0xff] %vm228, %v1162
    %1200 = vst.msk [vmem:[#allocation3 + $0x658] sm:$0xff] %vm228, %v1164
    %1201 = vst.msk [vmem:[#allocation3 + $0x660] sm:$0xff] %vm228, %v1166
    %1202 = vst.msk [vmem:[#allocation3 + $0x668] sm:$0xff] %vm228, %v1168
    %1203 = vst.msk [vmem:[#allocation3 + $0x670] sm:$0xff] %vm228, %v1170
    %1204 = vst.msk [vmem:[#allocation3 + $0x678] sm:$0xff] %vm228, %v1172
    %v1205 = vld [vmem:[#allocation2] sm:$0xff]
    %v1206 = vld [vmem:[#allocation2 + $0x8] sm:$0xff]
    %v1207 = vld [vmem:[#allocation2 + $0x10] sm:$0xff]
    %v1208 = vld [vmem:[#allocation2 + $0x18] sm:$0xff]
    %v1209 = vld [vmem:[#allocation2 + $0x20] sm:$0xff]
    %v1210 = vld [vmem:[#allocation2 + $0x28] sm:$0xff]
    %v1211 = vld [vmem:[#allocation2 + $0x30] sm:$0xff]
    %v1212 = vld [vmem:[#allocation2 + $0x38] sm:$0xff]
    %v1213 = vld [vmem:[#allocation2 + $0x40] sm:$0xff]
    %v1214 = vld [vmem:[#allocation2 + $0x48] sm:$0xff]
    %v1215 = vld [vmem:[#allocation2 + $0x50] sm:$0xff]
    %v1216 = vld [vmem:[#allocation2 + $0x58] sm:$0xff]
    %v1217 = vld [vmem:[#allocation2 + $0x60] sm:$0xff]
    %v1218 = vld [vmem:[#allocation2 + $0x68] sm:$0xff]
    %v1219 = vld [vmem:[#allocation2 + $0x70] sm:$0xff]
    %v1220 = vld [vmem:[#allocation2 + $0x78] sm:$0xff]
    %1237 = vrot.lane.b32.xlu0 %v1205, 117
    %v1238 = vpop.permute.xlu0 %1237
    %1239 = vrot.lane.b32.xlu0 %v1206, 117
    %v1240 = vpop.permute.xlu0 %1239
    %1241 = vrot.lane.b32.xlu0 %v1207, 117
    %v1242 = vpop.permute.xlu0 %1241
    %1243 = vrot.lane.b32.xlu0 %v1208, 117
    %v1244 = vpop.permute.xlu0 %1243
    %1245 = vrot.lane.b32.xlu0 %v1209, 117
    %v1246 = vpop.permute.xlu0 %1245
    %1247 = vrot.lane.b32.xlu0 %v1210, 117
    %v1248 = vpop.permute.xlu0 %1247
    %1249 = vrot.lane.b32.xlu0 %v1211, 117
    %v1250 = vpop.permute.xlu0 %1249
    %1251 = vrot.lane.b32.xlu0 %v1212, 117
    %v1252 = vpop.permute.xlu0 %1251
    %1253 = vrot.lane.b32.xlu0 %v1213, 117
    %v1254 = vpop.permute.xlu0 %1253
    %1255 = vrot.lane.b32.xlu0 %v1214, 117
    %v1256 = vpop.permute.xlu0 %1255
    %1257 = vrot.lane.b32.xlu0 %v1215, 117
    %v1258 = vpop.permute.xlu0 %1257
    %1259 = vrot.lane.b32.xlu0 %v1216, 117
    %v1260 = vpop.permute.xlu0 %1259
    %1261 = vrot.lane.b32.xlu0 %v1217, 117
    %v1262 = vpop.permute.xlu0 %1261
    %1263 = vrot.lane.b32.xlu0 %v1218, 117
    %v1264 = vpop.permute.xlu0 %1263
    %1265 = vrot.lane.b32.xlu0 %v1219, 117
    %v1266 = vpop.permute.xlu0 %1265
    %1267 = vrot.lane.b32.xlu0 %v1220, 117
    %v1268 = vpop.permute.xlu0 %1267
    %1285 = vst.msk [vmem:[#allocation3 + $0x2c0] sm:$0xff] %vm228, %v1238
    %1286 = vst.msk [vmem:[#allocation3 + $0x2c8] sm:$0xff] %vm228, %v1240
    %1287 = vst.msk [vmem:[#allocation3 + $0x2d0] sm:$0xff] %vm228, %v1242
    %1288 = vst.msk [vmem:[#allocation3 + $0x2d8] sm:$0xff] %vm228, %v1244
    %1289 = vst.msk [vmem:[#allocation3 + $0x2e0] sm:$0xff] %vm228, %v1246
    %1290 = vst.msk [vmem:[#allocation3 + $0x2e8] sm:$0xff] %vm228, %v1248
    %1291 = vst.msk [vmem:[#allocation3 + $0x2f0] sm:$0xff] %vm228, %v1250
    %1292 = vst.msk [vmem:[#allocation3 + $0x2f8] sm:$0xff] %vm228, %v1252
    %1293 = vst.msk [vmem:[#allocation3 + $0x680] sm:$0xff] %vm228, %v1254
    %1294 = vst.msk [vmem:[#allocation3 + $0x688] sm:$0xff] %vm228, %v1256
    %1295 = vst.msk [vmem:[#allocation3 + $0x690] sm:$0xff] %vm228, %v1258
    %1296 = vst.msk [vmem:[#allocation3 + $0x698] sm:$0xff] %vm228, %v1260
    %1297 = vst.msk [vmem:[#allocation3 + $0x6a0] sm:$0xff] %vm228, %v1262
    %1298 = vst.msk [vmem:[#allocation3 + $0x6a8] sm:$0xff] %vm228, %v1264
    %1299 = vst.msk [vmem:[#allocation3 + $0x6b0] sm:$0xff] %vm228, %v1266
    %1300 = vst.msk [vmem:[#allocation3 + $0x6b8] sm:$0xff] %vm228, %v1268
    %v1301 = vld [vmem:[#allocation2] sm:$0xff]
    %v1302 = vld [vmem:[#allocation2 + $0x8] sm:$0xff]
    %v1303 = vld [vmem:[#allocation2 + $0x10] sm:$0xff]
    %v1304 = vld [vmem:[#allocation2 + $0x18] sm:$0xff]
    %v1305 = vld [vmem:[#allocation2 + $0x20] sm:$0xff]
    %v1306 = vld [vmem:[#allocation2 + $0x28] sm:$0xff]
    %v1307 = vld [vmem:[#allocation2 + $0x30] sm:$0xff]
    %v1308 = vld [vmem:[#allocation2 + $0x38] sm:$0xff]
    %v1309 = vld [vmem:[#allocation2 + $0x40] sm:$0xff]
    %v1310 = vld [vmem:[#allocation2 + $0x48] sm:$0xff]
    %v1311 = vld [vmem:[#allocation2 + $0x50] sm:$0xff]
    %v1312 = vld [vmem:[#allocation2 + $0x58] sm:$0xff]
    %v1313 = vld [vmem:[#allocation2 + $0x60] sm:$0xff]
    %v1314 = vld [vmem:[#allocation2 + $0x68] sm:$0xff]
    %v1315 = vld [vmem:[#allocation2 + $0x70] sm:$0xff]
    %v1316 = vld [vmem:[#allocation2 + $0x78] sm:$0xff]
    %1333 = vrot.lane.b32.xlu0 %v1301, 116
    %v1334 = vpop.permute.xlu0 %1333
    %1335 = vrot.lane.b32.xlu0 %v1302, 116
    %v1336 = vpop.permute.xlu0 %1335
    %1337 = vrot.lane.b32.xlu0 %v1303, 116
    %v1338 = vpop.permute.xlu0 %1337
    %1339 = vrot.lane.b32.xlu0 %v1304, 116
    %v1340 = vpop.permute.xlu0 %1339
    %1341 = vrot.lane.b32.xlu0 %v1305, 116
    %v1342 = vpop.permute.xlu0 %1341
    %1343 = vrot.lane.b32.xlu0 %v1306, 116
    %v1344 = vpop.permute.xlu0 %1343
    %1345 = vrot.lane.b32.xlu0 %v1307, 116
    %v1346 = vpop.permute.xlu0 %1345
    %1347 = vrot.lane.b32.xlu0 %v1308, 116
    %v1348 = vpop.permute.xlu0 %1347
    %1349 = vrot.lane.b32.xlu0 %v1309, 116
    %v1350 = vpop.permute.xlu0 %1349
    %1351 = vrot.lane.b32.xlu0 %v1310, 116
    %v1352 = vpop.permute.xlu0 %1351
    %1353 = vrot.lane.b32.xlu0 %v1311, 116
    %v1354 = vpop.permute.xlu0 %1353
    %1355 = vrot.lane.b32.xlu0 %v1312, 116
    %v1356 = vpop.permute.xlu0 %1355
    %1357 = vrot.lane.b32.xlu0 %v1313, 116
    %v1358 = vpop.permute.xlu0 %1357
    %1359 = vrot.lane.b32.xlu0 %v1314, 116
    %v1360 = vpop.permute.xlu0 %1359
    %1361 = vrot.lane.b32.xlu0 %v1315, 116
    %v1362 = vpop.permute.xlu0 %1361
    %1363 = vrot.lane.b32.xlu0 %v1316, 116
    %v1364 = vpop.permute.xlu0 %1363
    %1381 = vst.msk [vmem:[#allocation3 + $0x300] sm:$0xff] %vm228, %v1334
    %1382 = vst.msk [vmem:[#allocation3 + $0x308] sm:$0xff] %vm228, %v1336
    %1383 = vst.msk [vmem:[#allocation3 + $0x310] sm:$0xff] %vm228, %v1338
    %1384 = vst.msk [vmem:[#allocation3 + $0x318] sm:$0xff] %vm228, %v1340
    %1385 = vst.msk [vmem:[#allocation3 + $0x320] sm:$0xff] %vm228, %v1342
    %1386 = vst.msk [vmem:[#allocation3 + $0x328] sm:$0xff] %vm228, %v1344
    %1387 = vst.msk [vmem:[#allocation3 + $0x330] sm:$0xff] %vm228, %v1346
    %1388 = vst.msk [vmem:[#allocation3 + $0x338] sm:$0xff] %vm228, %v1348
    %1389 = vst.msk [vmem:[#allocation3 + $0x6c0] sm:$0xff] %vm228, %v1350
    %1390 = vst.msk [vmem:[#allocation3 + $0x6c8] sm:$0xff] %vm228, %v1352
    %1391 = vst.msk [vmem:[#allocation3 + $0x6d0] sm:$0xff] %vm228, %v1354
    %1392 = vst.msk [vmem:[#allocation3 + $0x6d8] sm:$0xff] %vm228, %v1356
    %1393 = vst.msk [vmem:[#allocation3 + $0x6e0] sm:$0xff] %vm228, %v1358
    %1394 = vst.msk [vmem:[#allocation3 + $0x6e8] sm:$0xff] %vm228, %v1360
    %1395 = vst.msk [vmem:[#allocation3 + $0x6f0] sm:$0xff] %vm228, %v1362
    %1396 = vst.msk [vmem:[#allocation3 + $0x6f8] sm:$0xff] %vm228, %v1364
    %v1397 = vld [vmem:[#allocation2] sm:$0xff]
    %v1398 = vld [vmem:[#allocation2 + $0x8] sm:$0xff]
    %v1399 = vld [vmem:[#allocation2 + $0x10] sm:$0xff]
    %v1400 = vld [vmem:[#allocation2 + $0x18] sm:$0xff]
    %v1401 = vld [vmem:[#allocation2 + $0x20] sm:$0xff]
    %v1402 = vld [vmem:[#allocation2 + $0x28] sm:$0xff]
    %v1403 = vld [vmem:[#allocation2 + $0x30] sm:$0xff]
    %v1404 = vld [vmem:[#allocation2 + $0x38] sm:$0xff]
    %v1405 = vld [vmem:[#allocation2 + $0x40] sm:$0xff]
    %v1406 = vld [vmem:[#allocation2 + $0x48] sm:$0xff]
    %v1407 = vld [vmem:[#allocation2 + $0x50] sm:$0xff]
    %v1408 = vld [vmem:[#allocation2 + $0x58] sm:$0xff]
    %v1409 = vld [vmem:[#allocation2 + $0x60] sm:$0xff]
    %v1410 = vld [vmem:[#allocation2 + $0x68] sm:$0xff]
    %v1411 = vld [vmem:[#allocation2 + $0x70] sm:$0xff]
    %v1412 = vld [vmem:[#allocation2 + $0x78] sm:$0xff]
    %1429 = vrot.lane.b32.xlu0 %v1397, 115
    %v1430 = vpop.permute.xlu0 %1429
    %1431 = vrot.lane.b32.xlu0 %v1398, 115
    %v1432 = vpop.permute.xlu0 %1431
    %1433 = vrot.lane.b32.xlu0 %v1399, 115
    %v1434 = vpop.permute.xlu0 %1433
    %1435 = vrot.lane.b32.xlu0 %v1400, 115
    %v1436 = vpop.permute.xlu0 %1435
    %1437 = vrot.lane.b32.xlu0 %v1401, 115
    %v1438 = vpop.permute.xlu0 %1437
    %1439 = vrot.lane.b32.xlu0 %v1402, 115
    %v1440 = vpop.permute.xlu0 %1439
    %1441 = vrot.lane.b32.xlu0 %v1403, 115
    %v1442 = vpop.permute.xlu0 %1441
    %1443 = vrot.lane.b32.xlu0 %v1404, 115
    %v1444 = vpop.permute.xlu0 %1443
    %1445 = vrot.lane.b32.xlu0 %v1405, 115
    %v1446 = vpop.permute.xlu0 %1445
    %1447 = vrot.lane.b32.xlu0 %v1406, 115
    %v1448 = vpop.permute.xlu0 %1447
    %1449 = vrot.lane.b32.xlu0 %v1407, 115
    %v1450 = vpop.permute.xlu0 %1449
    %1451 = vrot.lane.b32.xlu0 %v1408, 115
    %v1452 = vpop.permute.xlu0 %1451
    %1453 = vrot.lane.b32.xlu0 %v1409, 115
    %v1454 = vpop.permute.xlu0 %1453
    %1455 = vrot.lane.b32.xlu0 %v1410, 115
    %v1456 = vpop.permute.xlu0 %1455
    %1457 = vrot.lane.b32.xlu0 %v1411, 115
    %v1458 = vpop.permute.xlu0 %1457
    %1459 = vrot.lane.b32.xlu0 %v1412, 115
    %v1460 = vpop.permute.xlu0 %1459
    %1477 = vst.msk [vmem:[#allocation3 + $0x340] sm:$0xff] %vm228, %v1430
    %1478 = vst.msk [vmem:[#allocation3 + $0x348] sm:$0xff] %vm228, %v1432
    %1479 = vst.msk [vmem:[#allocation3 + $0x350] sm:$0xff] %vm228, %v1434
    %1480 = vst.msk [vmem:[#allocation3 + $0x358] sm:$0xff] %vm228, %v1436
    %1481 = vst.msk [vmem:[#allocation3 + $0x360] sm:$0xff] %vm228, %v1438
    %1482 = vst.msk [vmem:[#allocation3 + $0x368] sm:$0xff] %vm228, %v1440
    %1483 = vst.msk [vmem:[#allocation3 + $0x370] sm:$0xff] %vm228, %v1442
    %1484 = vst.msk [vmem:[#allocation3 + $0x378] sm:$0xff] %vm228, %v1444
    %1485 = vst.msk [vmem:[#allocation3 + $0x700] sm:$0xff] %vm228, %v1446
    %1486 = vst.msk [vmem:[#allocation3 + $0x708] sm:$0xff] %vm228, %v1448
    %1487 = vst.msk [vmem:[#allocation3 + $0x710] sm:$0xff] %vm228, %v1450
    %1488 = vst.msk [vmem:[#allocation3 + $0x718] sm:$0xff] %vm228, %v1452
    %1489 = vst.msk [vmem:[#allocation3 + $0x720] sm:$0xff] %vm228, %v1454
    %1490 = vst.msk [vmem:[#allocation3 + $0x728] sm:$0xff] %vm228, %v1456
    %1491 = vst.msk [vmem:[#allocation3 + $0x730] sm:$0xff] %vm228, %v1458
    %1492 = vst.msk [vmem:[#allocation3 + $0x738] sm:$0xff] %vm228, %v1460
    %v1493 = vld [vmem:[#allocation2] sm:$0xff]
    %v1494 = vld [vmem:[#allocation2 + $0x8] sm:$0xff]
    %v1495 = vld [vmem:[#allocation2 + $0x10] sm:$0xff]
    %v1496 = vld [vmem:[#allocation2 + $0x18] sm:$0xff]
    %v1497 = vld [vmem:[#allocation2 + $0x20] sm:$0xff]
    %v1498 = vld [vmem:[#allocation2 + $0x28] sm:$0xff]
    %v1499 = vld [vmem:[#allocation2 + $0x30] sm:$0xff]
    %v1500 = vld [vmem:[#allocation2 + $0x38] sm:$0xff]
    %v1501 = vld [vmem:[#allocation2 + $0x40] sm:$0xff]
    %v1502 = vld [vmem:[#allocation2 + $0x48] sm:$0xff]
    %v1503 = vld [vmem:[#allocation2 + $0x50] sm:$0xff]
    %v1504 = vld [vmem:[#allocation2 + $0x58] sm:$0xff]
    %v1505 = vld [vmem:[#allocation2 + $0x60] sm:$0xff]
    %v1506 = vld [vmem:[#allocation2 + $0x68] sm:$0xff]
    %v1507 = vld [vmem:[#allocation2 + $0x70] sm:$0xff]
    %v1508 = vld [vmem:[#allocation2 + $0x78] sm:$0xff]
    %1525 = vrot.lane.b32.xlu0 %v1493, 114
    %v1526 = vpop.permute.xlu0 %1525
    %1527 = vrot.lane.b32.xlu0 %v1494, 114
    %v1528 = vpop.permute.xlu0 %1527
    %1529 = vrot.lane.b32.xlu0 %v1495, 114
    %v1530 = vpop.permute.xlu0 %1529
    %1531 = vrot.lane.b32.xlu0 %v1496, 114
    %v1532 = vpop.permute.xlu0 %1531
    %1533 = vrot.lane.b32.xlu0 %v1497, 114
    %v1534 = vpop.permute.xlu0 %1533
    %1535 = vrot.lane.b32.xlu0 %v1498, 114
    %v1536 = vpop.permute.xlu0 %1535
    %1537 = vrot.lane.b32.xlu0 %v1499, 114
    %v1538 = vpop.permute.xlu0 %1537
    %1539 = vrot.lane.b32.xlu0 %v1500, 114
    %v1540 = vpop.permute.xlu0 %1539
    %1541 = vrot.lane.b32.xlu0 %v1501, 114
    %v1542 = vpop.permute.xlu0 %1541
    %1543 = vrot.lane.b32.xlu0 %v1502, 114
    %v1544 = vpop.permute.xlu0 %1543
    %1545 = vrot.lane.b32.xlu0 %v1503, 114
    %v1546 = vpop.permute.xlu0 %1545
    %1547 = vrot.lane.b32.xlu0 %v1504, 114
    %v1548 = vpop.permute.xlu0 %1547
    %1549 = vrot.lane.b32.xlu0 %v1505, 114
    %v1550 = vpop.permute.xlu0 %1549
    %1551 = vrot.lane.b32.xlu0 %v1506, 114
    %v1552 = vpop.permute.xlu0 %1551
    %1553 = vrot.lane.b32.xlu0 %v1507, 114
    %v1554 = vpop.permute.xlu0 %1553
    %1555 = vrot.lane.b32.xlu0 %v1508, 114
    %v1556 = vpop.permute.xlu0 %1555
    %1573 = vst.msk [vmem:[#allocation3 + $0x380] sm:$0xff] %vm228, %v1526
    %1574 = vst.msk [vmem:[#allocation3 + $0x388] sm:$0xff] %vm228, %v1528
    %1575 = vst.msk [vmem:[#allocation3 + $0x390] sm:$0xff] %vm228, %v1530
    %1576 = vst.msk [vmem:[#allocation3 + $0x398] sm:$0xff] %vm228, %v1532
    %1577 = vst.msk [vmem:[#allocation3 + $0x3a0] sm:$0xff] %vm228, %v1534
    %1578 = vst.msk [vmem:[#allocation3 + $0x3a8] sm:$0xff] %vm228, %v1536
    %1579 = vst.msk [vmem:[#allocation3 + $0x3b0] sm:$0xff] %vm228, %v1538
    %1580 = vst.msk [vmem:[#allocation3 + $0x3b8] sm:$0xff] %vm228, %v1540
    %1581 = vst.msk [vmem:[#allocation3 + $0x740] sm:$0xff] %vm228, %v1542
    %1582 = vst.msk [vmem:[#allocation3 + $0x748] sm:$0xff] %vm228, %v1544
    %1583 = vst.msk [vmem:[#allocation3 + $0x750] sm:$0xff] %vm228, %v1546
    %1584 = vst.msk [vmem:[#allocation3 + $0x758] sm:$0xff] %vm228, %v1548
    %1585 = vst.msk [vmem:[#allocation3 + $0x760] sm:$0xff] %vm228, %v1550
    %1586 = vst.msk [vmem:[#allocation3 + $0x768] sm:$0xff] %vm228, %v1552
    %1587 = vst.msk [vmem:[#allocation3 + $0x770] sm:$0xff] %vm228, %v1554
    %1588 = vst.msk [vmem:[#allocation3 + $0x778] sm:$0xff] %vm228, %v1556
    %v1589 = vld [vmem:[#allocation7] sm:$0xff]
    %v1590 = vld [vmem:[#allocation7 + $0x8] sm:$0xff]
    %v1591 = vld [vmem:[#allocation3] sm:$0xff]
    %v1592 = vld [vmem:[#allocation3 + $0x8] sm:$0xff]
    %v1593 = vld [vmem:[#allocation3 + $0x10] sm:$0xff]
    %v1594 = vld [vmem:[#allocation3 + $0x18] sm:$0xff]
    %v1595 = vld [vmem:[#allocation3 + $0x20] sm:$0xff]
    %v1596 = vld [vmem:[#allocation3 + $0x28] sm:$0xff]
    %v1597 = vld [vmem:[#allocation3 + $0x30] sm:$0xff]
    %v1598 = vld [vmem:[#allocation3 + $0x38] sm:$0xff]
    %v1599 = vld [vmem:[#allocation3 + $0x40] sm:$0xff]
    %v1600 = vld [vmem:[#allocation3 + $0x48] sm:$0xff]
    %v1601 = vld [vmem:[#allocation3 + $0x50] sm:$0xff]
    %v1602 = vld [vmem:[#allocation3 + $0x58] sm:$0xff]
    %v1603 = vld [vmem:[#allocation3 + $0x60] sm:$0xff]
    %v1604 = vld [vmem:[#allocation3 + $0x68] sm:$0xff]
    %v1605 = vld [vmem:[#allocation3 + $0x70] sm:$0xff]
    %v1606 = vld [vmem:[#allocation3 + $0x78] sm:$0xff]
    %v1607 = vld [vmem:[#allocation3 + $0x80] sm:$0xff]
    %v1608 = vld [vmem:[#allocation3 + $0x88] sm:$0xff]
    %v1609 = vld [vmem:[#allocation3 + $0x90] sm:$0xff]
    %v1610 = vld [vmem:[#allocation3 + $0x98] sm:$0xff]
    %v1611 = vld [vmem:[#allocation3 + $0xa0] sm:$0xff]
    %v1612 = vld [vmem:[#allocation3 + $0xa8] sm:$0xff]
    %v1613 = vld [vmem:[#allocation3 + $0xb0] sm:$0xff]
    %v1614 = vld [vmem:[#allocation3 + $0xb8] sm:$0xff]
    %v1615 = vld [vmem:[#allocation3 + $0xc0] sm:$0xff]
    %v1616 = vld [vmem:[#allocation3 + $0xc8] sm:$0xff]
    %v1617 = vld [vmem:[#allocation3 + $0xd0] sm:$0xff]
    %v1618 = vld [vmem:[#allocation3 + $0xd8] sm:$0xff]
    %v1619 = vld [vmem:[#allocation3 + $0xe0] sm:$0xff]
    %v1620 = vld [vmem:[#allocation3 + $0xe8] sm:$0xff]
    %v1621 = vld [vmem:[#allocation3 + $0xf0] sm:$0xff]
    %v1622 = vld [vmem:[#allocation3 + $0xf8] sm:$0xff]
    %v1623 = vld [vmem:[#allocation3 + $0x100] sm:$0xff]
    %v1624 = vld [vmem:[#allocation3 + $0x108] sm:$0xff]
    %v1625 = vld [vmem:[#allocation3 + $0x110] sm:$0xff]
    %v1626 = vld [vmem:[#allocation3 + $0x118] sm:$0xff]
    %v1627 = vld [vmem:[#allocation3 + $0x120] sm:$0xff]
    %v1628 = vld [vmem:[#allocation3 + $0x128] sm:$0xff]
    %v1629 = vld [vmem:[#allocation3 + $0x130] sm:$0xff]
    %v1630 = vld [vmem:[#allocation3 + $0x138] sm:$0xff]
    %v1631 = vld [vmem:[#allocation3 + $0x140] sm:$0xff]
    %v1632 = vld [vmem:[#allocation3 + $0x148] sm:$0xff]
    %v1633 = vld [vmem:[#allocation3 + $0x150] sm:$0xff]
    %v1634 = vld [vmem:[#allocation3 + $0x158] sm:$0xff]
    %v1635 = vld [vmem:[#allocation3 + $0x160] sm:$0xff]
    %v1636 = vld [vmem:[#allocation3 + $0x168] sm:$0xff]
    %v1637 = vld [vmem:[#allocation3 + $0x170] sm:$0xff]
    %v1638 = vld [vmem:[#allocation3 + $0x178] sm:$0xff]
    %v1639 = vld [vmem:[#allocation3 + $0x180] sm:$0xff]
    %v1640 = vld [vmem:[#allocation3 + $0x188] sm:$0xff]
    %v1641 = vld [vmem:[#allocation3 + $0x190] sm:$0xff]
    %v1642 = vld [vmem:[#allocation3 + $0x198] sm:$0xff]
    %v1643 = vld [vmem:[#allocation3 + $0x1a0] sm:$0xff]
    %v1644 = vld [vmem:[#allocation3 + $0x1a8] sm:$0xff]
    %v1645 = vld [vmem:[#allocation3 + $0x1b0] sm:$0xff]
    %v1646 = vld [vmem:[#allocation3 + $0x1b8] sm:$0xff]
    %v1647 = vld [vmem:[#allocation3 + $0x1c0] sm:$0xff]
    %v1648 = vld [vmem:[#allocation3 + $0x1c8] sm:$0xff]
    %v1649 = vld [vmem:[#allocation3 + $0x1d0] sm:$0xff]
    %v1650 = vld [vmem:[#allocation3 + $0x1d8] sm:$0xff]
    %v1651 = vld [vmem:[#allocation3 + $0x1e0] sm:$0xff]
    %v1652 = vld [vmem:[#allocation3 + $0x1e8] sm:$0xff]
    %v1653 = vld [vmem:[#allocation3 + $0x1f0] sm:$0xff]
    %v1654 = vld [vmem:[#allocation3 + $0x1f8] sm:$0xff]
    %v1655 = vld [vmem:[#allocation3 + $0x200] sm:$0xff]
    %v1656 = vld [vmem:[#allocation3 + $0x208] sm:$0xff]
    %v1657 = vld [vmem:[#allocation3 + $0x210] sm:$0xff]
    %v1658 = vld [vmem:[#allocation3 + $0x218] sm:$0xff]
    %v1659 = vld [vmem:[#allocation3 + $0x220] sm:$0xff]
    %v1660 = vld [vmem:[#allocation3 + $0x228] sm:$0xff]
    %v1661 = vld [vmem:[#allocation3 + $0x230] sm:$0xff]
    %v1662 = vld [vmem:[#allocation3 + $0x238] sm:$0xff]
    %v1663 = vld [vmem:[#allocation3 + $0x240] sm:$0xff]
    %v1664 = vld [vmem:[#allocation3 + $0x248] sm:$0xff]
    %v1665 = vld [vmem:[#allocation3 + $0x250] sm:$0xff]
    %v1666 = vld [vmem:[#allocation3 + $0x258] sm:$0xff]
    %v1667 = vld [vmem:[#allocation3 + $0x260] sm:$0xff]
    %v1668 = vld [vmem:[#allocation3 + $0x268] sm:$0xff]
    %v1669 = vld [vmem:[#allocation3 + $0x270] sm:$0xff]
    %v1670 = vld [vmem:[#allocation3 + $0x278] sm:$0xff]
    %v1671 = vld [vmem:[#allocation3 + $0x280] sm:$0xff]
    %v1672 = vld [vmem:[#allocation3 + $0x288] sm:$0xff]
    %v1673 = vld [vmem:[#allocation3 + $0x290] sm:$0xff]
    %v1674 = vld [vmem:[#allocation3 + $0x298] sm:$0xff]
    %v1675 = vld [vmem:[#allocation3 + $0x2a0] sm:$0xff]
    %v1676 = vld [vmem:[#allocation3 + $0x2a8] sm:$0xff]
    %v1677 = vld [vmem:[#allocation3 + $0x2b0] sm:$0xff]
    %v1678 = vld [vmem:[#allocation3 + $0x2b8] sm:$0xff]
    %v1679 = vld [vmem:[#allocation3 + $0x2c0] sm:$0xff]
    %v1680 = vld [vmem:[#allocation3 + $0x2c8] sm:$0xff]
    %v1681 = vld [vmem:[#allocation3 + $0x2d0] sm:$0xff]
    %v1682 = vld [vmem:[#allocation3 + $0x2d8] sm:$0xff]
    %v1683 = vld [vmem:[#allocation3 + $0x2e0] sm:$0xff]
    %v1684 = vld [vmem:[#allocation3 + $0x2e8] sm:$0xff]
    %v1685 = vld [vmem:[#allocation3 + $0x2f0] sm:$0xff]
    %v1686 = vld [vmem:[#allocation3 + $0x2f8] sm:$0xff]
    %v1687 = vld [vmem:[#allocation3 + $0x300] sm:$0xff]
    %v1688 = vld [vmem:[#allocation3 + $0x308] sm:$0xff]
    %v1689 = vld [vmem:[#allocation3 + $0x310] sm:$0xff]
    %v1690 = vld [vmem:[#allocation3 + $0x318] sm:$0xff]
    %v1691 = vld [vmem:[#allocation3 + $0x320] sm:$0xff]
    %v1692 = vld [vmem:[#allocation3 + $0x328] sm:$0xff]
    %v1693 = vld [vmem:[#allocation3 + $0x330] sm:$0xff]
    %v1694 = vld [vmem:[#allocation3 + $0x338] sm:$0xff]
    %v1695 = vld [vmem:[#allocation3 + $0x340] sm:$0xff]
    %v1696 = vld [vmem:[#allocation3 + $0x348] sm:$0xff]
    %v1697 = vld [vmem:[#allocation3 + $0x350] sm:$0xff]
    %v1698 = vld [vmem:[#allocation3 + $0x358] sm:$0xff]
    %v1699 = vld [vmem:[#allocation3 + $0x360] sm:$0xff]
    %v1700 = vld [vmem:[#allocation3 + $0x368] sm:$0xff]
    %v1701 = vld [vmem:[#allocation3 + $0x370] sm:$0xff]
    %v1702 = vld [vmem:[#allocation3 + $0x378] sm:$0xff]
    %v1703 = vld [vmem:[#allocation3 + $0x380] sm:$0xff]
    %v1704 = vld [vmem:[#allocation3 + $0x388] sm:$0xff]
    %v1705 = vld [vmem:[#allocation3 + $0x390] sm:$0xff]
    %v1706 = vld [vmem:[#allocation3 + $0x398] sm:$0xff]
    %v1707 = vld [vmem:[#allocation3 + $0x3a0] sm:$0xff]
    %v1708 = vld [vmem:[#allocation3 + $0x3a8] sm:$0xff]
    %v1709 = vld [vmem:[#allocation3 + $0x3b0] sm:$0xff]
    %v1710 = vld [vmem:[#allocation3 + $0x3b8] sm:$0xff]
    %v1713 = vcombine.high %v1589, %v1589
    %v1715 = vunpack.c.l.s4 1983009808
    %v1716 = vunpack.c.0.s8 %v1715
    %v1717 = vlaneseq
    %v1718 = vshrl.u32 %v1717, 7
    %v1719 = vsub.s32 %v1716, %v1718
    %v1720 = vrot.slane %v1589, %v1719
    %v1722 = vunpack.c.l.s4 1983009808
    %v1723 = vunpack.c.0.s8 %v1722
    %v1724 = vlaneseq
    %v1725 = vshrl.u32 %v1724, 7
    %v1726 = vsub.s32 %v1723, %v1725
    %v1727 = vrot.slane %v1713, %v1726
    %v1728 = vcombine.high %v1720, %v1720
    %v1729 = vcombine.high %v1727, %v1727
    %v1730 = vcombine.high %v1590, %v1590
    %v1732 = vunpack.c.l.s4 1983009808
    %v1733 = vunpack.c.0.s8 %v1732
    %v1734 = vlaneseq
    %v1735 = vshrl.u32 %v1734, 7
    %v1736 = vsub.s32 %v1733, %v1735
    %v1737 = vrot.slane %v1590, %v1736
    %v1739 = vunpack.c.l.s4 1983009808
    %v1740 = vunpack.c.0.s8 %v1739
    %v1741 = vlaneseq
    %v1742 = vshrl.u32 %v1741, 7
    %v1743 = vsub.s32 %v1740, %v1742
    %v1744 = vrot.slane %v1730, %v1743
    %v1745 = vcombine.high %v1737, %v1737
    %v1746 = vcombine.high %v1744, %v1744
    %vm1754 = vcmask 523264
    %v1755 = vsel %vm1754, %v1746, 0
    %1757 = vmatprep.subr.mxu0 0.0
    %1758 = vmatpush1.msra.mxu0 %v1591
    %1759 = vmatprep.subr.mxu0 0.0
    %1760 = vmatpush1.msra.mxu0 %v1592
    %1761 = vmatprep.subr.mxu0 0.0
    %1762 = vmatpush1.msra.mxu0 %v1593
    %1763 = vmatprep.subr.mxu0 0.0
    %1764 = vmatpush1.msra.mxu0 %v1594
    %1765 = vmatprep.subr.mxu0 0.0
    %1766 = vmatpush1.msra.mxu0 %v1595
    %1767 = vmatprep.subr.mxu0 0.0
    %1768 = vmatpush1.msra.mxu0 %v1596
    %1769 = vmatprep.subr.mxu0 0.0
    %1770 = vmatpush1.msra.mxu0 %v1597
    %1771 = vmatprep.subr.mxu0 0.0
    %1772 = vmatpush1.msra.mxu0 %v1598
    %1773 = vmatprep.subr.mxu0 0.0
    %1774 = vmatpush1.msra.mxu0 %v1599
    %1775 = vmatprep.subr.mxu0 0.0
    %1776 = vmatpush1.msra.mxu0 %v1600
    %1777 = vmatprep.subr.mxu0 0.0
    %1778 = vmatpush1.msra.mxu0 %v1601
    %1779 = vmatprep.subr.mxu0 0.0
    %1780 = vmatpush1.msra.mxu0 %v1602
    %1781 = vmatprep.subr.mxu0 0.0
    %1782 = vmatpush1.msra.mxu0 %v1603
    %1783 = vmatprep.subr.mxu0 0.0
    %1784 = vmatpush1.msra.mxu0 %v1604
    %1785 = vmatprep.subr.mxu0 0.0
    %1786 = vmatpush1.msra.mxu0 %v1605
    %1787 = vmatprep.subr.mxu0 0.0
    %1788 = vmatpush1.msra.mxu0 %v1606
    %1789 = vmatprep.subr.mxu0 0.0
    %1790 = vmatpush1.msra.mxu0 %v1607
    %1791 = vmatprep.subr.mxu0 0.0
    %1792 = vmatpush1.msra.mxu0 %v1608
    %1793 = vmatprep.subr.mxu0 0.0
    %1794 = vmatpush1.msra.mxu0 %v1609
    %1795 = vmatprep.subr.mxu0 0.0
    %1796 = vmatpush1.msra.mxu0 %v1610
    %1797 = vmatprep.subr.mxu0 0.0
    %1798 = vmatpush1.msra.mxu0 %v1611
    %1799 = vmatprep.subr.mxu0 0.0
    %1800 = vmatpush1.msra.mxu0 %v1612
    %1801 = vmatprep.subr.mxu0 0.0
    %1802 = vmatpush1.msra.mxu0 %v1613
    %1803 = vmatprep.subr.mxu0 0.0
    %1804 = vmatpush1.msra.mxu0 %v1614
    %1805 = vmatprep.subr.mxu0 0.0
    %1806 = vmatpush1.msra.mxu0 %v1615
    %1807 = vmatprep.subr.mxu0 0.0
    %1808 = vmatpush1.msra.mxu0 %v1616
    %1809 = vmatprep.subr.mxu0 0.0
    %1810 = vmatpush1.msra.mxu0 %v1617
    %1811 = vmatprep.subr.mxu0 0.0
    %1812 = vmatpush1.msra.mxu0 %v1618
    %1813 = vmatprep.subr.mxu0 0.0
    %1814 = vmatpush1.msra.mxu0 %v1619
    %1815 = vmatprep.subr.mxu0 0.0
    %1816 = vmatpush1.msra.mxu0 %v1620
    %1817 = vmatprep.subr.mxu0 0.0
    %1818 = vmatpush1.msra.mxu0 %v1621
    %1819 = vmatprep.subr.mxu0 0.0
    %1820 = vmatpush1.msra.mxu0 %v1622
    %1821 = vmatprep.mubr.f32.mxu0 %v1728
    %1822 = vmatmul.mubr.f32.gmra.mrb[0].mxu0 %v1720
    %v1823 = vpop.f32.mrb[0].mxu0
    %v1824 = vadd.f32 0.0, %v1823
    %v1825 = vpop.f32.mrb[0].mxu0
    %1826 = vdwg.mxu0
    %1827 = vmatprep.subr.mxu0 0.0
    %1828 = vmatpush1.msra.mxu0 %v1623
    %1829 = vmatprep.subr.mxu0 0.0
    %1830 = vmatpush1.msra.mxu0 %v1624
    %1831 = vmatprep.subr.mxu0 0.0
    %1832 = vmatpush1.msra.mxu0 %v1625
    %1833 = vmatprep.subr.mxu0 0.0
    %1834 = vmatpush1.msra.mxu0 %v1626
    %1835 = vmatprep.subr.mxu0 0.0
    %1836 = vmatpush1.msra.mxu0 %v1627
    %1837 = vmatprep.subr.mxu0 0.0
    %1838 = vmatpush1.msra.mxu0 %v1628
    %1839 = vmatprep.subr.mxu0 0.0
    %1840 = vmatpush1.msra.mxu0 %v1629
    %1841 = vmatprep.subr.mxu0 0.0
    %1842 = vmatpush1.msra.mxu0 %v1630
    %1843 = vmatprep.subr.mxu0 0.0
    %1844 = vmatpush1.msra.mxu0 %v1631
    %1845 = vmatprep.subr.mxu0 0.0
    %1846 = vmatpush1.msra.mxu0 %v1632
    %1847 = vmatprep.subr.mxu0 0.0
    %1848 = vmatpush1.msra.mxu0 %v1633
    %1849 = vmatprep.subr.mxu0 0.0
    %1850 = vmatpush1.msra.mxu0 %v1634
    %1851 = vmatprep.subr.mxu0 0.0
    %1852 = vmatpush1.msra.mxu0 %v1635
    %1853 = vmatprep.subr.mxu0 0.0
    %1854 = vmatpush1.msra.mxu0 %v1636
    %1855 = vmatprep.subr.mxu0 0.0
    %1856 = vmatpush1.msra.mxu0 %v1637
    %1857 = vmatprep.subr.mxu0 0.0
    %1858 = vmatpush1.msra.mxu0 %v1638
    %1859 = vmatprep.subr.mxu0 0.0
    %1860 = vmatpush1.msra.mxu0 %v1639
    %1861 = vmatprep.subr.mxu0 0.0
    %1862 = vmatpush1.msra.mxu0 %v1640
    %1863 = vmatprep.subr.mxu0 0.0
    %1864 = vmatpush1.msra.mxu0 %v1641
    %1865 = vmatprep.subr.mxu0 0.0
    %1866 = vmatpush1.msra.mxu0 %v1642
    %1867 = vmatprep.subr.mxu0 0.0
    %1868 = vmatpush1.msra.mxu0 %v1643
    %1869 = vmatprep.subr.mxu0 0.0
    %1870 = vmatpush1.msra.mxu0 %v1644
    %1871 = vmatprep.subr.mxu0 0.0
    %1872 = vmatpush1.msra.mxu0 %v1645
    %1873 = vmatprep.subr.mxu0 0.0
    %1874 = vmatpush1.msra.mxu0 %v1646
    %1875 = vmatprep.subr.mxu0 0.0
    %1876 = vmatpush1.msra.mxu0 %v1647
    %1877 = vmatprep.subr.mxu0 0.0
    %1878 = vmatpush1.msra.mxu0 %v1648
    %1879 = vmatprep.subr.mxu0 0.0
    %1880 = vmatpush1.msra.mxu0 %v1649
    %1881 = vmatprep.subr.mxu0 0.0
    %1882 = vmatpush1.msra.mxu0 %v1650
    %1883 = vmatprep.subr.mxu0 0.0
    %1884 = vmatpush1.msra.mxu0 %v1651
    %1885 = vmatprep.subr.mxu0 0.0
    %1886 = vmatpush1.msra.mxu0 %v1652
    %1887 = vmatprep.subr.mxu0 0.0
    %1888 = vmatpush1.msra.mxu0 %v1653
    %1889 = vmatprep.subr.mxu0 0.0
    %1890 = vmatpush1.msra.mxu0 %v1654
    %1891 = vmatprep.mubr.f32.mxu0 %v1729
    %1892 = vmatmul.mubr.f32.gmra.mrb[0].mxu0 %v1727
    %v1893 = vpop.f32.mrb[0].mxu0
    %v1894 = vadd.f32 %v1824, %v1893
    %v1895 = vpop.f32.mrb[0].mxu0
    %1896 = vdwg.mxu0
    %1897 = vmatprep.subr.mxu0 0.0
    %1898 = vmatpush1.msra.mxu0 %v1655
    %1899 = vmatprep.subr.mxu0 0.0
    %1900 = vmatpush1.msra.mxu0 %v1656
    %1901 = vmatprep.subr.mxu0 0.0
    %1902 = vmatpush1.msra.mxu0 %v1657
    %1903 = vmatprep.subr.mxu0 0.0
    %1904 = vmatpush1.msra.mxu0 %v1658
    %1905 = vmatprep.subr.mxu0 0.0
    %1906 = vmatpush1.msra.mxu0 %v1659
    %1907 = vmatprep.subr.mxu0 0.0
    %1908 = vmatpush1.msra.mxu0 %v1660
    %1909 = vmatprep.subr.mxu0 0.0
    %1910 = vmatpush1.msra.mxu0 %v1661
    %1911 = vmatprep.subr.mxu0 0.0
    %1912 = vmatpush1.msra.mxu0 %v1662
    %1913 = vmatprep.subr.mxu0 0.0
    %1914 = vmatpush1.msra.mxu0 %v1663
    %1915 = vmatprep.subr.mxu0 0.0
    %1916 = vmatpush1.msra.mxu0 %v1664
    %1917 = vmatprep.subr.mxu0 0.0
    %1918 = vmatpush1.msra.mxu0 %v1665
    %1919 = vmatprep.subr.mxu0 0.0
    %1920 = vmatpush1.msra.mxu0 %v1666
    %1921 = vmatprep.subr.mxu0 0.0
    %1922 = vmatpush1.msra.mxu0 %v1667
    %1923 = vmatprep.subr.mxu0 0.0
    %1924 = vmatpush1.msra.mxu0 %v1668
    %1925 = vmatprep.subr.mxu0 0.0
    %1926 = vmatpush1.msra.mxu0 %v1669
    %1927 = vmatprep.subr.mxu0 0.0
    %1928 = vmatpush1.msra.mxu0 %v1670
    %1929 = vmatprep.subr.mxu0 0.0
    %1930 = vmatpush1.msra.mxu0 %v1671
    %1931 = vmatprep.subr.mxu0 0.0
    %1932 = vmatpush1.msra.mxu0 %v1672
    %1933 = vmatprep.subr.mxu0 0.0
    %1934 = vmatpush1.msra.mxu0 %v1673
    %1935 = vmatprep.subr.mxu0 0.0
    %1936 = vmatpush1.msra.mxu0 %v1674
    %1937 = vmatprep.subr.mxu0 0.0
    %1938 = vmatpush1.msra.mxu0 %v1675
    %1939 = vmatprep.subr.mxu0 0.0
    %1940 = vmatpush1.msra.mxu0 %v1676
    %1941 = vmatprep.subr.mxu0 0.0
    %1942 = vmatpush1.msra.mxu0 %v1677
    %1943 = vmatprep.subr.mxu0 0.0
    %1944 = vmatpush1.msra.mxu0 %v1678
    %1945 = vmatprep.subr.mxu0 0.0
    %1946 = vmatpush1.msra.mxu0 %v1679
    %1947 = vmatprep.subr.mxu0 0.0
    %1948 = vmatpush1.msra.mxu0 %v1680
    %1949 = vmatprep.subr.mxu0 0.0
    %1950 = vmatpush1.msra.mxu0 %v1681
    %1951 = vmatprep.subr.mxu0 0.0
    %1952 = vmatpush1.msra.mxu0 %v1682
    %1953 = vmatprep.subr.mxu0 0.0
    %1954 = vmatpush1.msra.mxu0 %v1683
    %1955 = vmatprep.subr.mxu0 0.0
    %1956 = vmatpush1.msra.mxu0 %v1684
    %1957 = vmatprep.subr.mxu0 0.0
    %1958 = vmatpush1.msra.mxu0 %v1685
    %1959 = vmatprep.subr.mxu0 0.0
    %1960 = vmatpush1.msra.mxu0 %v1686
    %1961 = vmatprep.mubr.f32.mxu0 %v1745
    %1962 = vmatmul.mubr.f32.gmra.mrb[0].mxu0 %v1737
    %v1963 = vpop.f32.mrb[0].mxu0
    %v1964 = vadd.f32 %v1894, %v1963
    %v1965 = vpop.f32.mrb[0].mxu0
    %1966 = vdwg.mxu0
    %1967 = vmatprep.subr.mxu0 0.0
    %1968 = vmatpush1.msra.mxu0 %v1687
    %1969 = vmatprep.subr.mxu0 0.0
    %1970 = vmatpush1.msra.mxu0 %v1688
    %1971 = vmatprep.subr.mxu0 0.0
    %1972 = vmatpush1.msra.mxu0 %v1689
    %1973 = vmatprep.subr.mxu0 0.0
    %1974 = vmatpush1.msra.mxu0 %v1690
    %1975 = vmatprep.subr.mxu0 0.0
    %1976 = vmatpush1.msra.mxu0 %v1691
    %1977 = vmatprep.subr.mxu0 0.0
    %1978 = vmatpush1.msra.mxu0 %v1692
    %1979 = vmatprep.subr.mxu0 0.0
    %1980 = vmatpush1.msra.mxu0 %v1693
    %1981 = vmatprep.subr.mxu0 0.0
    %1982 = vmatpush1.msra.mxu0 %v1694
    %1983 = vmatprep.subr.mxu0 0.0
    %1984 = vmatpush1.msra.mxu0 %v1695
    %1985 = vmatprep.subr.mxu0 0.0
    %1986 = vmatpush1.msra.mxu0 %v1696
    %1987 = vmatprep.subr.mxu0 0.0
    %1988 = vmatpush1.msra.mxu0 %v1697
    %1989 = vmatprep.subr.mxu0 0.0
    %1990 = vmatpush1.msra.mxu0 %v1698
    %1991 = vmatprep.subr.mxu0 0.0
    %1992 = vmatpush1.msra.mxu0 %v1699
    %1993 = vmatprep.subr.mxu0 0.0
    %1994 = vmatpush1.msra.mxu0 %v1700
    %1995 = vmatprep.subr.mxu0 0.0
    %1996 = vmatpush1.msra.mxu0 %v1701
    %1997 = vmatprep.subr.mxu0 0.0
    %1998 = vmatpush1.msra.mxu0 %v1702
    %1999 = vmatprep.subr.mxu0 0.0
    %2000 = vmatpush1.msra.mxu0 %v1703
    %2001 = vmatprep.subr.mxu0 0.0
    %2002 = vmatpush1.msra.mxu0 %v1704
    %2003 = vmatprep.subr.mxu0 0.0
    %2004 = vmatpush1.msra.mxu0 %v1705
    %2005 = vmatprep.subr.mxu0 0.0
    %2006 = vmatpush1.msra.mxu0 %v1706
    %2007 = vmatprep.subr.mxu0 0.0
    %2008 = vmatpush1.msra.mxu0 %v1707
    %2009 = vmatprep.subr.mxu0 0.0
    %2010 = vmatpush1.msra.mxu0 %v1708
    %2011 = vmatprep.subr.mxu0 0.0
    %2012 = vmatpush1.msra.mxu0 %v1709
    %2013 = vmatprep.subr.mxu0 0.0
    %2014 = vmatpush1.msra.mxu0 %v1710
    %2015 = vmatprep.subr.mxu0 0.0
    %2016 = vmatpush1.msra.mxu0 0.0
    %2017 = vmatprep.subr.mxu0 0.0
    %2018 = vmatpush1.msra.mxu0 0.0
    %2019 = vmatprep.subr.mxu0 0.0
    %2020 = vmatpush1.msra.mxu0 0.0
    %2021 = vmatprep.subr.mxu0 0.0
    %2022 = vmatpush1.msra.mxu0 0.0
    %2023 = vmatprep.subr.mxu0 0.0
    %2024 = vmatpush1.msra.mxu0 0.0
    %2025 = vmatprep.subr.mxu0 0.0
    %2026 = vmatpush1.msra.mxu0 0.0
    %2027 = vmatprep.subr.mxu0 0.0
    %2028 = vmatpush1.msra.mxu0 0.0
    %2029 = vmatprep.subr.mxu0 0.0
    %2030 = vmatpush1.msra.mxu0 0.0
    %2031 = vmatprep.mubr.f32.mxu0 %v1755
    %2032 = vmatmul.mubr.f32.gmra.mrb[0].mxu0 %v1744
    %v2033 = vpop.f32.mrb[0].mxu0
    %v2034 = vadd.f32 %v1964, %v2033
    %v2035 = vpop.f32.mrb[0].mxu0
    %2036 = vdwg.mxu0
    %s2037 = scalar_lea.vmem [#allocation3], 960
    %v2038 = vld [vmem:[%s2037] sm:$0xff]
    %v2039 = vld [vmem:[%s2037 + $0x8] sm:$0xff]
    %v2040 = vld [vmem:[%s2037 + $0x10] sm:$0xff]
    %v2041 = vld [vmem:[%s2037 + $0x18] sm:$0xff]
    %v2042 = vld [vmem:[%s2037 + $0x20] sm:$0xff]
    %v2043 = vld [vmem:[%s2037 + $0x28] sm:$0xff]
    %v2044 = vld [vmem:[%s2037 + $0x30] sm:$0xff]
    %v2045 = vld [vmem:[%s2037 + $0x38] sm:$0xff]
    %v2046 = vld [vmem:[%s2037 + $0x40] sm:$0xff]
    %v2047 = vld [vmem:[%s2037 + $0x48] sm:$0xff]
    %v2048 = vld [vmem:[%s2037 + $0x50] sm:$0xff]
    %v2049 = vld [vmem:[%s2037 + $0x58] sm:$0xff]
    %v2050 = vld [vmem:[%s2037 + $0x60] sm:$0xff]
    %v2051 = vld [vmem:[%s2037 + $0x68] sm:$0xff]
    %v2052 = vld [vmem:[%s2037 + $0x70] sm:$0xff]
    %v2053 = vld [vmem:[%s2037 + $0x78] sm:$0xff]
    %v2054 = vld [vmem:[%s2037 + $0x80] sm:$0xff]
    %v2055 = vld [vmem:[%s2037 + $0x88] sm:$0xff]
    %v2056 = vld [vmem:[%s2037 + $0x90] sm:$0xff]
    %v2057 = vld [vmem:[%s2037 + $0x98] sm:$0xff]
    %v2058 = vld [vmem:[%s2037 + $0xa0] sm:$0xff]
    %v2059 = vld [vmem:[%s2037 + $0xa8] sm:$0xff]
    %v2060 = vld [vmem:[%s2037 + $0xb0] sm:$0xff]
    %v2061 = vld [vmem:[%s2037 + $0xb8] sm:$0xff]
    %v2062 = vld [vmem:[%s2037 + $0xc0] sm:$0xff]
    %v2063 = vld [vmem:[%s2037 + $0xc8] sm:$0xff]
    %v2064 = vld [vmem:[%s2037 + $0xd0] sm:$0xff]
    %v2065 = vld [vmem:[%s2037 + $0xd8] sm:$0xff]
    %v2066 = vld [vmem:[%s2037 + $0xe0] sm:$0xff]
    %v2067 = vld [vmem:[%s2037 + $0xe8] sm:$0xff]
    %v2068 = vld [vmem:[%s2037 + $0xf0] sm:$0xff]
    %v2069 = vld [vmem:[%s2037 + $0xf8] sm:$0xff]
    %v2070 = vld [vmem:[%s2037 + $0x100] sm:$0xff]
    %v2071 = vld [vmem:[%s2037 + $0x108] sm:$0xff]
    %v2072 = vld [vmem:[%s2037 + $0x110] sm:$0xff]
    %v2073 = vld [vmem:[%s2037 + $0x118] sm:$0xff]
    %v2074 = vld [vmem:[%s2037 + $0x120] sm:$0xff]
    %v2075 = vld [vmem:[%s2037 + $0x128] sm:$0xff]
    %v2076 = vld [vmem:[%s2037 + $0x130] sm:$0xff]
    %v2077 = vld [vmem:[%s2037 + $0x138] sm:$0xff]
    %v2078 = vld [vmem:[%s2037 + $0x140] sm:$0xff]
    %v2079 = vld [vmem:[%s2037 + $0x148] sm:$0xff]
    %v2080 = vld [vmem:[%s2037 + $0x150] sm:$0xff]
    %v2081 = vld [vmem:[%s2037 + $0x158] sm:$0xff]
    %v2082 = vld [vmem:[%s2037 + $0x160] sm:$0xff]
    %v2083 = vld [vmem:[%s2037 + $0x168] sm:$0xff]
    %v2084 = vld [vmem:[%s2037 + $0x170] sm:$0xff]
    %v2085 = vld [vmem:[%s2037 + $0x178] sm:$0xff]
    %v2086 = vld [vmem:[%s2037 + $0x180] sm:$0xff]
    %v2087 = vld [vmem:[%s2037 + $0x188] sm:$0xff]
    %v2088 = vld [vmem:[%s2037 + $0x190] sm:$0xff]
    %v2089 = vld [vmem:[%s2037 + $0x198] sm:$0xff]
    %v2090 = vld [vmem:[%s2037 + $0x1a0] sm:$0xff]
    %v2091 = vld [vmem:[%s2037 + $0x1a8] sm:$0xff]
    %v2092 = vld [vmem:[%s2037 + $0x1b0] sm:$0xff]
    %v2093 = vld [vmem:[%s2037 + $0x1b8] sm:$0xff]
    %v2094 = vld [vmem:[%s2037 + $0x1c0] sm:$0xff]
    %v2095 = vld [vmem:[%s2037 + $0x1c8] sm:$0xff]
    %v2096 = vld [vmem:[%s2037 + $0x1d0] sm:$0xff]
    %v2097 = vld [vmem:[%s2037 + $0x1d8] sm:$0xff]
    %v2098 = vld [vmem:[%s2037 + $0x1e0] sm:$0xff]
    %v2099 = vld [vmem:[%s2037 + $0x1e8] sm:$0xff]
    %v2100 = vld [vmem:[%s2037 + $0x1f0] sm:$0xff]
    %v2101 = vld [vmem:[%s2037 + $0x1f8] sm:$0xff]
    %v2102 = vld [vmem:[%s2037 + $0x200] sm:$0xff]
    %v2103 = vld [vmem:[%s2037 + $0x208] sm:$0xff]
    %v2104 = vld [vmem:[%s2037 + $0x210] sm:$0xff]
    %v2105 = vld [vmem:[%s2037 + $0x218] sm:$0xff]
    %v2106 = vld [vmem:[%s2037 + $0x220] sm:$0xff]
    %v2107 = vld [vmem:[%s2037 + $0x228] sm:$0xff]
    %v2108 = vld [vmem:[%s2037 + $0x230] sm:$0xff]
    %v2109 = vld [vmem:[%s2037 + $0x238] sm:$0xff]
    %v2110 = vld [vmem:[%s2037 + $0x240] sm:$0xff]
    %v2111 = vld [vmem:[%s2037 + $0x248] sm:$0xff]
    %v2112 = vld [vmem:[%s2037 + $0x250] sm:$0xff]
    %v2113 = vld [vmem:[%s2037 + $0x258] sm:$0xff]
    %v2114 = vld [vmem:[%s2037 + $0x260] sm:$0xff]
    %v2115 = vld [vmem:[%s2037 + $0x268] sm:$0xff]
    %v2116 = vld [vmem:[%s2037 + $0x270] sm:$0xff]
    %v2117 = vld [vmem:[%s2037 + $0x278] sm:$0xff]
    %v2118 = vld [vmem:[%s2037 + $0x280] sm:$0xff]
    %v2119 = vld [vmem:[%s2037 + $0x288] sm:$0xff]
    %v2120 = vld [vmem:[%s2037 + $0x290] sm:$0xff]
    %v2121 = vld [vmem:[%s2037 + $0x298] sm:$0xff]
    %v2122 = vld [vmem:[%s2037 + $0x2a0] sm:$0xff]
    %v2123 = vld [vmem:[%s2037 + $0x2a8] sm:$0xff]
    %v2124 = vld [vmem:[%s2037 + $0x2b0] sm:$0xff]
    %v2125 = vld [vmem:[%s2037 + $0x2b8] sm:$0xff]
    %v2126 = vld [vmem:[%s2037 + $0x2c0] sm:$0xff]
    %v2127 = vld [vmem:[%s2037 + $0x2c8] sm:$0xff]
    %v2128 = vld [vmem:[%s2037 + $0x2d0] sm:$0xff]
    %v2129 = vld [vmem:[%s2037 + $0x2d8] sm:$0xff]
    %v2130 = vld [vmem:[%s2037 + $0x2e0] sm:$0xff]
    %v2131 = vld [vmem:[%s2037 + $0x2e8] sm:$0xff]
    %v2132 = vld [vmem:[%s2037 + $0x2f0] sm:$0xff]
    %v2133 = vld [vmem:[%s2037 + $0x2f8] sm:$0xff]
    %v2134 = vld [vmem:[%s2037 + $0x300] sm:$0xff]
    %v2135 = vld [vmem:[%s2037 + $0x308] sm:$0xff]
    %v2136 = vld [vmem:[%s2037 + $0x310] sm:$0xff]
    %v2137 = vld [vmem:[%s2037 + $0x318] sm:$0xff]
    %v2138 = vld [vmem:[%s2037 + $0x320] sm:$0xff]
    %v2139 = vld [vmem:[%s2037 + $0x328] sm:$0xff]
    %v2140 = vld [vmem:[%s2037 + $0x330] sm:$0xff]
    %v2141 = vld [vmem:[%s2037 + $0x338] sm:$0xff]
    %v2142 = vld [vmem:[%s2037 + $0x340] sm:$0xff]
    %v2143 = vld [vmem:[%s2037 + $0x348] sm:$0xff]
    %v2144 = vld [vmem:[%s2037 + $0x350] sm:$0xff]
    %v2145 = vld [vmem:[%s2037 + $0x358] sm:$0xff]
    %v2146 = vld [vmem:[%s2037 + $0x360] sm:$0xff]
    %v2147 = vld [vmem:[%s2037 + $0x368] sm:$0xff]
    %v2148 = vld [vmem:[%s2037 + $0x370] sm:$0xff]
    %v2149 = vld [vmem:[%s2037 + $0x378] sm:$0xff]
    %v2150 = vld [vmem:[%s2037 + $0x380] sm:$0xff]
    %v2151 = vld [vmem:[%s2037 + $0x388] sm:$0xff]
    %v2152 = vld [vmem:[%s2037 + $0x390] sm:$0xff]
    %v2153 = vld [vmem:[%s2037 + $0x398] sm:$0xff]
    %v2154 = vld [vmem:[%s2037 + $0x3a0] sm:$0xff]
    %v2155 = vld [vmem:[%s2037 + $0x3a8] sm:$0xff]
    %v2156 = vld [vmem:[%s2037 + $0x3b0] sm:$0xff]
    %v2157 = vld [vmem:[%s2037 + $0x3b8] sm:$0xff]
    %2158 = vmatprep.subr.mxu0 0.0
    %2159 = vmatpush1.msra.mxu0 %v2038
    %2160 = vmatprep.subr.mxu0 0.0
    %2161 = vmatpush1.msra.mxu0 %v2039
    %2162 = vmatprep.subr.mxu0 0.0
    %2163 = vmatpush1.msra.mxu0 %v2040
    %2164 = vmatprep.subr.mxu0 0.0
    %2165 = vmatpush1.msra.mxu0 %v2041
    %2166 = vmatprep.subr.mxu0 0.0
    %2167 = vmatpush1.msra.mxu0 %v2042
    %2168 = vmatprep.subr.mxu0 0.0
    %2169 = vmatpush1.msra.mxu0 %v2043
    %2170 = vmatprep.subr.mxu0 0.0
    %2171 = vmatpush1.msra.mxu0 %v2044
    %2172 = vmatprep.subr.mxu0 0.0
    %2173 = vmatpush1.msra.mxu0 %v2045
    %2174 = vmatprep.subr.mxu0 0.0
    %2175 = vmatpush1.msra.mxu0 %v2046
    %2176 = vmatprep.subr.mxu0 0.0
    %2177 = vmatpush1.msra.mxu0 %v2047
    %2178 = vmatprep.subr.mxu0 0.0
    %2179 = vmatpush1.msra.mxu0 %v2048
    %2180 = vmatprep.subr.mxu0 0.0
    %2181 = vmatpush1.msra.mxu0 %v2049
    %2182 = vmatprep.subr.mxu0 0.0
    %2183 = vmatpush1.msra.mxu0 %v2050
    %2184 = vmatprep.subr.mxu0 0.0
    %2185 = vmatpush1.msra.mxu0 %v2051
    %2186 = vmatprep.subr.mxu0 0.0
    %2187 = vmatpush1.msra.mxu0 %v2052
    %2188 = vmatprep.subr.mxu0 0.0
    %2189 = vmatpush1.msra.mxu0 %v2053
    %2190 = vmatprep.subr.mxu0 0.0
    %2191 = vmatpush1.msra.mxu0 %v2054
    %2192 = vmatprep.subr.mxu0 0.0
    %2193 = vmatpush1.msra.mxu0 %v2055
    %2194 = vmatprep.subr.mxu0 0.0
    %2195 = vmatpush1.msra.mxu0 %v2056
    %2196 = vmatprep.subr.mxu0 0.0
    %2197 = vmatpush1.msra.mxu0 %v2057
    %2198 = vmatprep.subr.mxu0 0.0
    %2199 = vmatpush1.msra.mxu0 %v2058
    %2200 = vmatprep.subr.mxu0 0.0
    %2201 = vmatpush1.msra.mxu0 %v2059
    %2202 = vmatprep.subr.mxu0 0.0
    %2203 = vmatpush1.msra.mxu0 %v2060
    %2204 = vmatprep.subr.mxu0 0.0
    %2205 = vmatpush1.msra.mxu0 %v2061
    %2206 = vmatprep.subr.mxu0 0.0
    %2207 = vmatpush1.msra.mxu0 %v2062
    %2208 = vmatprep.subr.mxu0 0.0
    %2209 = vmatpush1.msra.mxu0 %v2063
    %2210 = vmatprep.subr.mxu0 0.0
    %2211 = vmatpush1.msra.mxu0 %v2064
    %2212 = vmatprep.subr.mxu0 0.0
    %2213 = vmatpush1.msra.mxu0 %v2065
    %2214 = vmatprep.subr.mxu0 0.0
    %2215 = vmatpush1.msra.mxu0 %v2066
    %2216 = vmatprep.subr.mxu0 0.0
    %2217 = vmatpush1.msra.mxu0 %v2067
    %2218 = vmatprep.subr.mxu0 0.0
    %2219 = vmatpush1.msra.mxu0 %v2068
    %2220 = vmatprep.subr.mxu0 0.0
    %2221 = vmatpush1.msra.mxu0 %v2069
    %2222 = vmatprep.mubr.f32.mxu0 %v1728
    %2223 = vmatmul.mubr.f32.gmra.mrb[0].mxu0 %v1720
    %v2224 = vpop.f32.mrb[0].mxu0
    %v2225 = vadd.f32 0.0, %v2224
    %v2226 = vpop.f32.mrb[0].mxu0
    %2227 = vdwg.mxu0
    %2228 = vmatprep.subr.mxu0 0.0
    %2229 = vmatpush1.msra.mxu0 %v2070
    %2230 = vmatprep.subr.mxu0 0.0
    %2231 = vmatpush1.msra.mxu0 %v2071
    %2232 = vmatprep.subr.mxu0 0.0
    %2233 = vmatpush1.msra.mxu0 %v2072
    %2234 = vmatprep.subr.mxu0 0.0
    %2235 = vmatpush1.msra.mxu0 %v2073
    %2236 = vmatprep.subr.mxu0 0.0
    %2237 = vmatpush1.msra.mxu0 %v2074
    %2238 = vmatprep.subr.mxu0 0.0
    %2239 = vmatpush1.msra.mxu0 %v2075
    %2240 = vmatprep.subr.mxu0 0.0
    %2241 = vmatpush1.msra.mxu0 %v2076
    %2242 = vmatprep.subr.mxu0 0.0
    %2243 = vmatpush1.msra.mxu0 %v2077
    %2244 = vmatprep.subr.mxu0 0.0
    %2245 = vmatpush1.msra.mxu0 %v2078
    %2246 = vmatprep.subr.mxu0 0.0
    %2247 = vmatpush1.msra.mxu0 %v2079
    %2248 = vmatprep.subr.mxu0 0.0
    %2249 = vmatpush1.msra.mxu0 %v2080
    %2250 = vmatprep.subr.mxu0 0.0
    %2251 = vmatpush1.msra.mxu0 %v2081
    %2252 = vmatprep.subr.mxu0 0.0
    %2253 = vmatpush1.msra.mxu0 %v2082
    %2254 = vmatprep.subr.mxu0 0.0
    %2255 = vmatpush1.msra.mxu0 %v2083
    %2256 = vmatprep.subr.mxu0 0.0
    %2257 = vmatpush1.msra.mxu0 %v2084
    %2258 = vmatprep.subr.mxu0 0.0
    %2259 = vmatpush1.msra.mxu0 %v2085
    %2260 = vmatprep.subr.mxu0 0.0
    %2261 = vmatpush1.msra.mxu0 %v2086
    %2262 = vmatprep.subr.mxu0 0.0
    %2263 = vmatpush1.msra.mxu0 %v2087
    %2264 = vmatprep.subr.mxu0 0.0
    %2265 = vmatpush1.msra.mxu0 %v2088
    %2266 = vmatprep.subr.mxu0 0.0
    %2267 = vmatpush1.msra.mxu0 %v2089
    %2268 = vmatprep.subr.mxu0 0.0
    %2269 = vmatpush1.msra.mxu0 %v2090
    %2270 = vmatprep.subr.mxu0 0.0
    %2271 = vmatpush1.msra.mxu0 %v2091
    %2272 = vmatprep.subr.mxu0 0.0
    %2273 = vmatpush1.msra.mxu0 %v2092
    %2274 = vmatprep.subr.mxu0 0.0
    %2275 = vmatpush1.msra.mxu0 %v2093
    %2276 = vmatprep.subr.mxu0 0.0
    %2277 = vmatpush1.msra.mxu0 %v2094
    %2278 = vmatprep.subr.mxu0 0.0
    %2279 = vmatpush1.msra.mxu0 %v2095
    %2280 = vmatprep.subr.mxu0 0.0
    %2281 = vmatpush1.msra.mxu0 %v2096
    %2282 = vmatprep.subr.mxu0 0.0
    %2283 = vmatpush1.msra.mxu0 %v2097
    %2284 = vmatprep.subr.mxu0 0.0
    %2285 = vmatpush1.msra.mxu0 %v2098
    %2286 = vmatprep.subr.mxu0 0.0
    %2287 = vmatpush1.msra.mxu0 %v2099
    %2288 = vmatprep.subr.mxu0 0.0
    %2289 = vmatpush1.msra.mxu0 %v2100
    %2290 = vmatprep.subr.mxu0 0.0
    %2291 = vmatpush1.msra.mxu0 %v2101
    %2292 = vmatprep.mubr.f32.mxu0 %v1729
    %2293 = vmatmul.mubr.f32.gmra.mrb[0].mxu0 %v1727
    %v2294 = vpop.f32.mrb[0].mxu0
    %v2295 = vadd.f32 %v2225, %v2294
    %v2296 = vpop.f32.mrb[0].mxu0
    %2297 = vdwg.mxu0
    %2298 = vmatprep.subr.mxu0 0.0
    %2299 = vmatpush1.msra.mxu0 %v2102
    %2300 = vmatprep.subr.mxu0 0.0
    %2301 = vmatpush1.msra.mxu0 %v2103
    %2302 = vmatprep.subr.mxu0 0.0
    %2303 = vmatpush1.msra.mxu0 %v2104
    %2304 = vmatprep.subr.mxu0 0.0
    %2305 = vmatpush1.msra.mxu0 %v2105
    %2306 = vmatprep.subr.mxu0 0.0
    %2307 = vmatpush1.msra.mxu0 %v2106
    %2308 = vmatprep.subr.mxu0 0.0
    %2309 = vmatpush1.msra.mxu0 %v2107
    %2310 = vmatprep.subr.mxu0 0.0
    %2311 = vmatpush1.msra.mxu0 %v2108
    %2312 = vmatprep.subr.mxu0 0.0
    %2313 = vmatpush1.msra.mxu0 %v2109
    %2314 = vmatprep.subr.mxu0 0.0
    %2315 = vmatpush1.msra.mxu0 %v2110
    %2316 = vmatprep.subr.mxu0 0.0
    %2317 = vmatpush1.msra.mxu0 %v2111
    %2318 = vmatprep.subr.mxu0 0.0
    %2319 = vmatpush1.msra.mxu0 %v2112
    %2320 = vmatprep.subr.mxu0 0.0
    %2321 = vmatpush1.msra.mxu0 %v2113
    %2322 = vmatprep.subr.mxu0 0.0
    %2323 = vmatpush1.msra.mxu0 %v2114
    %2324 = vmatprep.subr.mxu0 0.0
    %2325 = vmatpush1.msra.mxu0 %v2115
    %2326 = vmatprep.subr.mxu0 0.0
    %2327 = vmatpush1.msra.mxu0 %v2116
    %2328 = vmatprep.subr.mxu0 0.0
    %2329 = vmatpush1.msra.mxu0 %v2117
    %2330 = vmatprep.subr.mxu0 0.0
    %2331 = vmatpush1.msra.mxu0 %v2118
    %2332 = vmatprep.subr.mxu0 0.0
    %2333 = vmatpush1.msra.mxu0 %v2119
    %2334 = vmatprep.subr.mxu0 0.0
    %2335 = vmatpush1.msra.mxu0 %v2120
    %2336 = vmatprep.subr.mxu0 0.0
    %2337 = vmatpush1.msra.mxu0 %v2121
    %2338 = vmatprep.subr.mxu0 0.0
    %2339 = vmatpush1.msra.mxu0 %v2122
    %2340 = vmatprep.subr.mxu0 0.0
    %2341 = vmatpush1.msra.mxu0 %v2123
    %2342 = vmatprep.subr.mxu0 0.0
    %2343 = vmatpush1.msra.mxu0 %v2124
    %2344 = vmatprep.subr.mxu0 0.0
    %2345 = vmatpush1.msra.mxu0 %v2125
    %2346 = vmatprep.subr.mxu0 0.0
    %2347 = vmatpush1.msra.mxu0 %v2126
    %2348 = vmatprep.subr.mxu0 0.0
    %2349 = vmatpush1.msra.mxu0 %v2127
    %2350 = vmatprep.subr.mxu0 0.0
    %2351 = vmatpush1.msra.mxu0 %v2128
    %2352 = vmatprep.subr.mxu0 0.0
    %2353 = vmatpush1.msra.mxu0 %v2129
    %2354 = vmatprep.subr.mxu0 0.0
    %2355 = vmatpush1.msra.mxu0 %v2130
    %2356 = vmatprep.subr.mxu0 0.0
    %2357 = vmatpush1.msra.mxu0 %v2131
    %2358 = vmatprep.subr.mxu0 0.0
    %2359 = vmatpush1.msra.mxu0 %v2132
    %2360 = vmatprep.subr.mxu0 0.0
    %2361 = vmatpush1.msra.mxu0 %v2133
    %2362 = vmatprep.mubr.f32.mxu0 %v1745
    %2363 = vmatmul.mubr.f32.gmra.mrb[0].mxu0 %v1737
    %v2364 = vpop.f32.mrb[0].mxu0
    %v2365 = vadd.f32 %v2295, %v2364
    %v2366 = vpop.f32.mrb[0].mxu0
    %2367 = vdwg.mxu0
    %2368 = vmatprep.subr.mxu0 0.0
    %2369 = vmatpush1.msra.mxu0 %v2134
    %2370 = vmatprep.subr.mxu0 0.0
    %2371 = vmatpush1.msra.mxu0 %v2135
    %2372 = vmatprep.subr.mxu0 0.0
    %2373 = vmatpush1.msra.mxu0 %v2136
    %2374 = vmatprep.subr.mxu0 0.0
    %2375 = vmatpush1.msra.mxu0 %v2137
    %2376 = vmatprep.subr.mxu0 0.0
    %2377 = vmatpush1.msra.mxu0 %v2138
    %2378 = vmatprep.subr.mxu0 0.0
    %2379 = vmatpush1.msra.mxu0 %v2139
    %2380 = vmatprep.subr.mxu0 0.0
    %2381 = vmatpush1.msra.mxu0 %v2140
    %2382 = vmatprep.subr.mxu0 0.0
    %2383 = vmatpush1.msra.mxu0 %v2141
    %2384 = vmatprep.subr.mxu0 0.0
    %2385 = vmatpush1.msra.mxu0 %v2142
    %2386 = vmatprep.subr.mxu0 0.0
    %2387 = vmatpush1.msra.mxu0 %v2143
    %2388 = vmatprep.subr.mxu0 0.0
    %2389 = vmatpush1.msra.mxu0 %v2144
    %2390 = vmatprep.subr.mxu0 0.0
    %2391 = vmatpush1.msra.mxu0 %v2145
    %2392 = vmatprep.subr.mxu0 0.0
    %2393 = vmatpush1.msra.mxu0 %v2146
    %2394 = vmatprep.subr.mxu0 0.0
    %2395 = vmatpush1.msra.mxu0 %v2147
    %2396 = vmatprep.subr.mxu0 0.0
    %2397 = vmatpush1.msra.mxu0 %v2148
    %2398 = vmatprep.subr.mxu0 0.0
    %2399 = vmatpush1.msra.mxu0 %v2149
    %2400 = vmatprep.subr.mxu0 0.0
    %2401 = vmatpush1.msra.mxu0 %v2150
    %2402 = vmatprep.subr.mxu0 0.0
    %2403 = vmatpush1.msra.mxu0 %v2151
    %2404 = vmatprep.subr.mxu0 0.0
    %2405 = vmatpush1.msra.mxu0 %v2152
    %2406 = vmatprep.subr.mxu0 0.0
    %2407 = vmatpush1.msra.mxu0 %v2153
    %2408 = vmatprep.subr.mxu0 0.0
    %2409 = vmatpush1.msra.mxu0 %v2154
    %2410 = vmatprep.subr.mxu0 0.0
    %2411 = vmatpush1.msra.mxu0 %v2155
    %2412 = vmatprep.subr.mxu0 0.0
    %2413 = vmatpush1.msra.mxu0 %v2156
    %2414 = vmatprep.subr.mxu0 0.0
    %2415 = vmatpush1.msra.mxu0 %v2157
    %2416 = vmatprep.subr.mxu0 0.0
    %2417 = vmatpush1.msra.mxu0 0.0
    %2418 = vmatprep.subr.mxu0 0.0
    %2419 = vmatpush1.msra.mxu0 0.0
    %2420 = vmatprep.subr.mxu0 0.0
    %2421 = vmatpush1.msra.mxu0 0.0
    %2422 = vmatprep.subr.mxu0 0.0
    %2423 = vmatpush1.msra.mxu0 0.0
    %2424 = vmatprep.subr.mxu0 0.0
    %2425 = vmatpush1.msra.mxu0 0.0
    %2426 = vmatprep.subr.mxu0 0.0
    %2427 = vmatpush1.msra.mxu0 0.0
    %2428 = vmatprep.subr.mxu0 0.0
    %2429 = vmatpush1.msra.mxu0 0.0
    %2430 = vmatprep.subr.mxu0 0.0
    %2431 = vmatpush1.msra.mxu0 0.0
    %2432 = vmatprep.mubr.f32.mxu0 %v1755
    %2433 = vmatmul.mubr.f32.gmra.mrb[0].mxu0 %v1744
    %v2434 = vpop.f32.mrb[0].mxu0
    %v2435 = vadd.f32 %v2365, %v2434
    %v2436 = vpop.f32.mrb[0].mxu0
    %2437 = vdwg.mxu0
    %v2438 = vld [vmem:[#allocation9] sm:$0x3]
    %2440 = vset.pattern.permute.xlu0 0
    %2441 = vperm.xlu0 %2440, %v2438
    %v2442 = vpop.permute.xlu0 %2441
    %v2444 = vadd.f32 %v2034, %v2442
    %v2445 = vadd.f32 %v2435, %v2442
    %vm2446 = vcmask 123904
    %v2447 = vsel %vm2446, %v2444, 0.0
    %v2448 = vsel %vm2446, %v2445, 0.0
    %v2449 = vadd.f32 %v2447, %v2448
    %v2450 = vsel %vm2446, %v2449, 0.0
    %2451 = vadd.xlane.f32.xlu0 %v2450
    %v2452 = vpop.xlane.xlu0 %2451
    %v2453 = vmul.f32 %v2452, 0.03125
    %v2454 = vsub.f32 %v2444, %v2453
    %v2455 = vsub.f32 %v2445, %v2453
    %v2456 = vmul.f32 %v2454, %v2454
    %v2457 = vmul.f32 %v2455, %v2455
    %v2458 = vsel %vm2446, %v2456, 0.0
    %v2459 = vsel %vm2446, %v2457, 0.0
    %v2460 = vadd.f32 %v2458, %v2459
    %v2461 = vsel %vm2446, %v2460, 0.0
    %2462 = vadd.xlane.f32.xlu0 %v2461
    %v2463 = vpop.xlane.xlu0 %2462
    %v2464 = vmul.f32 %v2463, 0.03125
    %v2465 = vadd.f32 %v2464, 1e-05
    %v2466 = vrsqrt.pop %v2465
    %v2467 = vmul.f32 %v2454, %v2466
    %v2468 = vmul.f32 %v2455, %v2466
    %v2469 = vld [vmem:[#allocation10] sm:$0x3]
    %2471 = vset.pattern.permute.xlu0 0
    %2472 = vperm.xlu0 %2471, %v2469
    %v2473 = vpop.permute.xlu0 %2472
    %v2475 = vmul.f32 %v2467, %v2473
    %v2476 = vmul.f32 %v2468, %v2473
    %v2477 = vld [vmem:[#allocation12] sm:$0x3]
    %2479 = vset.pattern.permute.xlu0 0
    %2480 = vperm.xlu0 %2479, %v2477
    %v2481 = vpop.permute.xlu0 %2480
    %v2483 = vadd.f32 %v2475, %v2481
    %v2484 = vadd.f32 %v2476, %v2481
    %2485 = vst.msk [vmem:[#allocation13] sm:$0x3] %vm2446, %v2483
    %2486 = vst.msk [vmem:[#allocation13 + $0x2] sm:$0x3] %vm2446, %v2484
    // Predicated region
    $region42: #{outconv1d_v3_forward.1} parent=1 // pred_check
      _
    $region43: #{outconv1d_v3_forward.1} parent=1 // pred_check_branch
      %2488 = sbr.rel (0) target = $region45
    $region44: #{outconv1d_v3_forward.1} parent=1 // pred_region
      %s2490 = ssub.s32 64, 64
      %2491 = vsyncadd [#allocation6], %s2490
      %s2492 = sshll.u32 [#allocation13], 4
      %s2493 = int_to_ptr.vmem [resolvable:$true] %s2492
      %2498 = dma.vmem_to_hbm [thread:$0]  %s2493, 64, %s5, [#allocation6], 32, 32, 2
    $region45: #{outconv1d_v3_forward.1} parent=1 // pred_fallthru
      _
    // Predicated region
    $region46: #{outconv1d_v3_forward.1} parent=1 // pred_check
      _
    $region47: #{outconv1d_v3_forward.1} parent=1 // pred_check_branch
      %2500 = sbr.rel (0) target = $region49
    $region48: #{outconv1d_v3_forward.1} parent=1 // pred_region
      %2501 = dma.done [#allocation6], 64
    $region49: #{outconv1d_v3_forward.1} parent=1 // pred_fallthru
      _
    %2502 = vsyncpa [#allocation5], 1
    %2503 = vsyncpa [#allocation8], 1
    %2504 = vsyncpa [#allocation11], 1
    %2505 = vsyncpa [#allocation6], 1

</llo_original>
